<compile_context>
chip_gen: v6e
topology: v6e:2x2x1
jax: 0.10.0
libtpu: 0.0.40
codegen_flags: <defaults>
</compile_context>

<pallas_src>
import math

import jax
import jax.numpy as jnp
from jax import lax
from jax.experimental import pallas as pl
from jax.experimental.pallas import tpu as pltpu


def _round_up(x: int, m: int) -> int:
    return ((x + m - 1) // m) * m


def _tpu_config():
    """(num_splits, vmem_limit_bytes, per_input_block_bytes) for this TPU generation.

    v7x     : 2 TensorCores/chip, 64 MiB VMEM/TC -> split the batch sum across cores,
              4 MiB blocks (2 inputs x 2 pipeline buffers = 16 MiB << 32 MiB scoped).
    v5e/v6e : 1 TensorCore, 128 MiB VMEM -> no split, 8 MiB blocks, 64 MiB limit.
    unknown : conservative settings that fit every generation.
    """
    kind = ""
    try:
        kind = (jax.devices()[0].device_kind or "").lower()
    except Exception:
        pass
    vmem_cap = None
    try:
        info = pltpu.get_tpu_info()
        vmem_cap = getattr(info, "vmem_capacity_bytes", None)
    except Exception:
        pass
    is_v7 = ("v7" in kind) or (vmem_cap is not None and vmem_cap <= 64 * 1024 * 1024)
    if is_v7:
        return 2, 32 * 1024 * 1024, 4 * 1024 * 1024
    if vmem_cap is not None and vmem_cap >= 128 * 1024 * 1024:
        return 1, 64 * 1024 * 1024, 8 * 1024 * 1024
    return 1, 32 * 1024 * 1024, 4 * 1024 * 1024


def _make_contrastive_loss_kernel(margin, eps, n_valid_rows, pack, tile_r,
                                  tiles_per_split):
    """Builds the kernel; all config is closed over as Python ints/floats."""
    eps2 = eps * eps
    use_mxu = pack > 1

    def kernel(*refs):
        if use_mxu:
            a_ref, c_ref, d_ref, s_ref, out_ref = refs
        else:
            a_ref, c_ref, d_ref, out_ref = refs
            s_ref = None

        i = pl.program_id(0)   # partial-sum split (one per TensorCore on v7x)
        j = pl.program_id(1)   # batch tile within the split (reduction axis)

        # The output block index is constant across j, so out_ref stays resident
        # across the whole reduction; accumulate directly into it.
        @pl.when(j == 0)
        def _init():
            out_ref[...] = jnp.zeros_like(out_ref)

        a = a_ref[...]         # (tile_r, lane_width) f32
        c = c_ref[...]         # (tile_r, lane_width) f32
        d = d_ref[...]         # (tile_r, pack)       f32

        if use_mxu:
            # Segment (block-diagonal) matrix, DMA'd once (constant index_map) and
            # kept resident: per-original-row sums become one MXU matmul instead of
            # XLU reductions, keeping the VPU/XLU slots free on the hot path.
            s_mat = s_ref[...]

            def row_sum(x):
                return jnp.dot(x, s_mat,
                               precision=lax.Precision.HIGHEST,
                               preferred_element_type=jnp.float32)
        else:
            def row_sum(x):
                return jnp.sum(x, axis=-1, keepdims=True)

        dot = row_sum(a * c)          # (tile_r, pack)
        na2 = row_sum(a * a)
        nc2 = row_sum(c * c)

        # max(sqrt(x), eps) == sqrt(max(x, eps^2)); rsqrt runs on the EUP slot.
        inv_denom = (lax.rsqrt(jnp.maximum(na2, eps2)) *
                     lax.rsqrt(jnp.maximum(nc2, eps2)))
        score = dot * inv_denom

        per_row = (1.0 - d) * jnp.square(1.0 - score) + \
                  d * jnp.square(jnp.maximum(score - margin, 0.0))

        block_id = i * tiles_per_split + j
        # Does this block reach past the true batch (grid padding / pack padding /
        # boundary block of a non-divisible array)?  Only then pay for the mask.
        needs_mask = (block_id + 1) * (tile_r * pack) > n_valid_rows

        @pl.when(needs_mask)
        def _accum_masked():
            packed_row = block_id * tile_r + \
                lax.broadcasted_iota(jnp.int32, (tile_r, pack), 0)
            orig_row = packed_row * pack + \
                lax.broadcasted_iota(jnp.int32, (tile_r, pack), 1)
            masked = jnp.where(orig_row < n_valid_rows, per_row, 0.0)
            out_ref[...] += jnp.sum(masked).reshape(1, 1, 1)

        @pl.when(jnp.logical_not(needs_mask))
        def _accum_full():
            out_ref[...] += jnp.sum(per_row).reshape(1, 1, 1)

    return kernel


def _reference_loss(anchor, contrastive, distance, margin=0.5, eps=1e-7):
    """Plain-JAX reference mirroring the PyTorch module (also the tiny-input path)."""
    dot = jnp.sum(anchor * contrastive, axis=-1)
    na = jnp.linalg.norm(anchor, axis=-1)
    nc = jnp.linalg.norm(contrastive, axis=-1)
    score = dot / (jnp.maximum(na, eps) * jnp.maximum(nc, eps))
    similar_loss = (1.0 - distance) * jnp.square(1.0 - score)
    dissimilar_loss = distance * jnp.square(jnp.maximum(score - margin, 0.0))
    return jnp.mean(similar_loss + dissimilar_loss)


def contrastive_loss_with_margin(anchor, contrastive, distance, margin=0.5,
                                 eps=1e-7, force_kernel=False):
    """anchor, contrastive: (B, D) float32; distance: (B,) float32 -> scalar f32."""
    anchor = jnp.asarray(anchor, jnp.float32)
    contrastive = jnp.asarray(contrastive, jnp.float32)
    distance = jnp.asarray(distance, jnp.float32).reshape(-1)

    B, D = anchor.shape

    # Tiny inputs: launch/pipeline overhead dominates -> let XLA fuse the formula.
    if not force_kernel and B * D <= 16384:
        return _reference_loss(anchor, contrastive, distance, margin, eps)

    num_splits, vmem_limit, block_bytes = _tpu_config()

    # Lane-dense packing: put `pack` rows into one lane-aligned row when D < 128.
    if D < 128:
        lane_width = math.lcm(D, 128)
        pack = lane_width // D
        if lane_width * pack * 4 > (1 << 20):   # keep the segment matrix tiny
            pack, lane_width = 1, D
    else:
        pack, lane_width = 1, D

    # Only pad to a multiple of `pack` (at most pack-1 rows), and only when needed,
    # so the packing reshape stays cheap.  No full grid-alignment padding: boundary
    # blocks are masked inside the kernel instead.
    b_pad = _round_up(B, pack)
    if b_pad != B:
        a_in = jnp.pad(anchor, ((0, b_pad - B), (0, 0)))
        c_in = jnp.pad(contrastive, ((0, b_pad - B), (0, 0)))
        d_in = jnp.pad(distance, ((0, b_pad - B),))
    else:
        a_in, c_in, d_in = anchor, contrastive, distance

    packed_rows = b_pad // pack
    a_p = a_in.reshape(packed_rows, lane_width)
    c_p = c_in.reshape(packed_rows, lane_width)
    d_p = d_in.reshape(packed_rows, pack)

    # Tile sizing: biggest block that fits the per-generation budget
    # (2 inputs x 2 pipeline buffers x block must stay inside the scoped VMEM limit).
    tile_r_max = max(8, (block_bytes // (lane_width * 4)) // 8 * 8)
    tile_r = min(tile_r_max, _round_up(pl.cdiv(packed_rows, num_splits), 8))
    tiles_per_split = pl.cdiv(packed_rows, num_splits * tile_r)

    # Clamp input block indices so grid-padding steps (possible when num_splits=2)
    # never issue an out-of-range DMA; their contribution is masked to zero anyway.
    last_block = max(pl.cdiv(packed_rows, tile_r) - 1, 0)

    def in_idx(i, j):
        return (jnp.minimum(i * tiles_per_split + j, last_block), 0)

    kernel = _make_contrastive_loss_kernel(
        float(margin), float(eps), B, pack, tile_r, tiles_per_split)

    in_specs = [
        pl.BlockSpec((tile_r, lane_width), in_idx),
        pl.BlockSpec((tile_r, lane_width), in_idx),
        pl.BlockSpec((tile_r, pack), in_idx),
    ]
    operands = [a_p, c_p, d_p]
    if pack > 1:
        lane = jnp.arange(lane_width, dtype=jnp.int32)[:, None]
        seg = jnp.arange(pack, dtype=jnp.int32)[None, :]
        s_mat = (lane // D == seg).astype(jnp.float32)     # (lane_width, pack)
        in_specs.append(pl.BlockSpec((lane_width, pack), lambda i, j: (0, 0)))
        operands.append(s_mat)

    partial = pl.pallas_call(
        kernel,
        out_shape=jax.ShapeDtypeStruct((num_splits, 1, 1), jnp.float32),
        grid=(num_splits, tiles_per_split),
        in_specs=in_specs,
        out_specs=pl.BlockSpec((1, 1, 1), lambda i, j: (i, 0, 0)),
        compiler_params=pltpu.CompilerParams(
            dimension_semantics=("parallel", "arbitrary"),
            vmem_limit_bytes=vmem_limit,
        ),
        cost_estimate=pl.CostEstimate(
            flops=8 * B * D,
            transcendentals=2 * B,
            bytes_accessed=2 * B * D * 4 + B * 4 + num_splits * 4,
        ),
    )(*operands)

    # Finish the mean with the TRUE batch size (padding / boundary rows were masked).
    return jnp.sum(partial) / B


if __name__ == "__main__":
    # Small demo shapes (batch of 8 embedding pairs, hidden=32), forced through the
    # Pallas kernel so the kernel path itself is exercised and verified.
    key = jax.random.PRNGKey(0)
    k1, k2, k3 = jax.random.split(key, 3)

    B, D = 8, 32
    anchor = jax.random.normal(k1, (B, D), dtype=jnp.float32)
    contrastive = jax.random.normal(k2, (B, D), dtype=jnp.float32)
    # distance labels in {0, 1} (0 = similar pair, 1 = dissimilar pair)
    distance = jax.random.bernoulli(k3, p=0.5, shape=(B,)).astype(jnp.float32)

    loss = contrastive_loss_with_margin(anchor, contrastive, distance,
                                        margin=0.5, force_kernel=True)
    loss = jax.block_until_ready(loss)
    ref = _reference_loss(anchor, contrastive, distance, margin=0.5)
    assert jnp.allclose(loss, ref, atol=1e-5, rtol=1e-4), (loss, ref)

    # Grid-unaligned batch: exercises the boundary-block masking without any padding.
    k4, k5, k6 = jax.random.split(jax.random.PRNGKey(1), 3)
    B2 = 1000
    a2 = jax.random.normal(k4, (B2, D), dtype=jnp.float32)
    c2 = jax.random.normal(k5, (B2, D), dtype=jnp.float32)
    d2 = jax.random.bernoulli(k6, p=0.5, shape=(B2,)).astype(jnp.float32)
    loss2 = jax.block_until_ready(
        contrastive_loss_with_margin(a2, c2, d2, margin=0.5, force_kernel=True))
    ref2 = _reference_loss(a2, c2, d2, margin=0.5)
    assert jnp.allclose(loss2, ref2, atol=1e-5, rtol=1e-4), (loss2, ref2)

    # Larger batch: exercises the multi-tile reduction (direct out_ref accumulation)
    # plus both the unmasked interior-block and masked boundary-block paths.
    k7, k8, k9 = jax.random.split(jax.random.PRNGKey(2), 3)
    B3 = 70000
    a3 = jax.random.normal(k7, (B3, D), dtype=jnp.float32)
    c3 = jax.random.normal(k8, (B3, D), dtype=jnp.float32)
    d3 = jax.random.bernoulli(k9, p=0.5, shape=(B3,)).astype(jnp.float32)
    loss3 = jax.block_until_ready(
        contrastive_loss_with_margin(a3, c3, d3, margin=0.5))
    ref3 = _reference_loss(a3, c3, d3, margin=0.5)
    assert jnp.allclose(loss3, ref3, atol=1e-5, rtol=1e-4), (loss3, ref3)

    print("KERNEL_OK")
</pallas_src>

<mosaic_0001>
module attributes {stable_mosaic.version = 11 : i64} {
  func.func @kernel(%arg0: i32, %arg1: i32, %arg2: memref<8x128xf32, #tpu.memory_space<vmem>>, %arg3: memref<8x128xf32, #tpu.memory_space<vmem>>, %arg4: memref<8x4xf32, #tpu.memory_space<vmem>>, %arg5: memref<128x4xf32, #tpu.memory_space<vmem>>, %arg6: memref<1x1x1xf32, #tpu.memory_space<vmem>>) attributes {dimension_semantics = [#tpu.dimension_semantics<parallel>, #tpu.dimension_semantics<arbitrary>], iteration_bounds = array<i64: 1, 1>, scalar_prefetch = 0 : i64, scratch_operands = 0 : i64, tpu.core_type = #tpu.core_type<tc>, window_params = [{transform_indices = @transform_0, window_bounds = array<i64: 8, 128>}, {transform_indices = @transform_1, window_bounds = array<i64: 8, 128>}, {transform_indices = @transform_2, window_bounds = array<i64: 8, 4>}, {pipeline_mode = #tpu.pipeline_mode<synchronous>, transform_indices = @transform_3, window_bounds = array<i64: 128, 4>}, {transform_indices = @transform_4, window_bounds = array<i64: 1, 1, 1>}]} {
    %c0_i32 = arith.constant 0 : i32
    %0 = arith.cmpi eq, %arg1, %c0_i32 : i32
    %1 = arith.extui %0 : i1 to i32
    %c0_i32_0 = arith.constant 0 : i32
    %2 = arith.cmpi ne, %1, %c0_i32_0 : i32
    scf.if %2 {
      %cst_19 = arith.constant 0.000000e+00 : f32
      %44 = vector.broadcast %cst_19 : f32 to vector<1x1x1xf32>
      %c0_20 = arith.constant 0 : index
      %c0_21 = arith.constant 0 : index
      %c0_22 = arith.constant 0 : index
      %45 = vector.load %arg6[%c0_20, %c0_21, %c0_22] : memref<1x1x1xf32, #tpu.memory_space<vmem>>, vector<1x1x1xf32>
      tpu.vector_store %arg6[%c0_20, %c0_21, %c0_22], %44 {strides = array<i32>} : memref<1x1x1xf32, #tpu.memory_space<vmem>>, vector<1x1x1xf32>,
    } else {
    }
    %c0 = arith.constant 0 : index
    %c0_1 = arith.constant 0 : index
    %3 = vector.load %arg2[%c0, %c0_1] : memref<8x128xf32, #tpu.memory_space<vmem>>, vector<8x128xf32>
    %c0_2 = arith.constant 0 : index
    %c0_3 = arith.constant 0 : index
    %4 = vector.load %arg3[%c0_2, %c0_3] : memref<8x128xf32, #tpu.memory_space<vmem>>, vector<8x128xf32>
    %c0_4 = arith.constant 0 : index
    %c0_5 = arith.constant 0 : index
    %5 = vector.load %arg4[%c0_4, %c0_5] : memref<8x4xf32, #tpu.memory_space<vmem>>, vector<8x4xf32>
    %c0_6 = arith.constant 0 : index
    %c0_7 = arith.constant 0 : index
    %6 = vector.load %arg5[%c0_6, %c0_7] : memref<128x4xf32, #tpu.memory_space<vmem>>, vector<128x4xf32>
    %7 = arith.mulf %3, %4 : vector<8x128xf32>
    %cst = arith.constant dense<0.000000e+00> : vector<8x4xf32>
    %8 = tpu.matmul %7, %6, %cst {dimension_numbers = #tpu.dot_dimension_numbers<[1], [0], [0], [1], [0, 0, 1, 1], [], []>, precision = #tpu.contract_precision<fp32>} : vector<8x128xf32>, vector<128x4xf32>, vector<8x4xf32> -> vector<8x4xf32>
    %9 = arith.mulf %3, %3 : vector<8x128xf32>
    %cst_8 = arith.constant dense<0.000000e+00> : vector<8x4xf32>
    %10 = tpu.matmul %9, %6, %cst_8 {dimension_numbers = #tpu.dot_dimension_numbers<[1], [0], [0], [1], [0, 0, 1, 1], [], []>, precision = #tpu.contract_precision<fp32>} : vector<8x128xf32>, vector<128x4xf32>, vector<8x4xf32> -> vector<8x4xf32>
    %11 = arith.mulf %4, %4 : vector<8x128xf32>
    %cst_9 = arith.constant dense<0.000000e+00> : vector<8x4xf32>
    %12 = tpu.matmul %11, %6, %cst_9 {dimension_numbers = #tpu.dot_dimension_numbers<[1], [0], [0], [1], [0, 0, 1, 1], [], []>, precision = #tpu.contract_precision<fp32>} : vector<8x128xf32>, vector<128x4xf32>, vector<8x4xf32> -> vector<8x4xf32>
    %cst_10 = arith.constant 9.99999982E-15 : f32
    %13 = vector.broadcast %cst_10 : f32 to vector<8x4xf32>
    %14 = arith.maximumf %10, %13 : vector<8x4xf32>
    %15 = math.rsqrt %14 : vector<8x4xf32>
    %cst_11 = arith.constant 9.99999982E-15 : f32
    %16 = vector.broadcast %cst_11 : f32 to vector<8x4xf32>
    %17 = arith.maximumf %12, %16 : vector<8x4xf32>
    %18 = math.rsqrt %17 : vector<8x4xf32>
    %19 = arith.mulf %15, %18 : vector<8x4xf32>
    %20 = arith.mulf %8, %19 : vector<8x4xf32>
    %cst_12 = arith.constant 1.000000e+00 : f32
    %21 = vector.broadcast %cst_12 : f32 to vector<8x4xf32>
    %22 = arith.subf %21, %5 : vector<8x4xf32>
    %cst_13 = arith.constant 1.000000e+00 : f32
    %23 = vector.broadcast %cst_13 : f32 to vector<8x4xf32>
    %24 = arith.subf %23, %20 : vector<8x4xf32>
    %25 = arith.mulf %24, %24 : vector<8x4xf32>
    %26 = arith.mulf %22, %25 : vector<8x4xf32>
    %cst_14 = arith.constant 5.000000e-01 : f32
    %27 = vector.broadcast %cst_14 : f32 to vector<8x4xf32>
    %28 = arith.subf %20, %27 : vector<8x4xf32>
    %cst_15 = arith.constant 0.000000e+00 : f32
    %29 = vector.broadcast %cst_15 : f32 to vector<8x4xf32>
    %30 = arith.maximumf %28, %29 : vector<8x4xf32>
    %31 = arith.mulf %30, %30 : vector<8x4xf32>
    %32 = arith.mulf %5, %31 : vector<8x4xf32>
    %33 = arith.addf %26, %32 : vector<8x4xf32>
    %c1_i32 = arith.constant 1 : i32
    %34 = arith.muli %arg0, %c1_i32 : i32
    %35 = arith.addi %34, %arg1 : i32
    %c1_i32_16 = arith.constant 1 : i32
    %36 = arith.addi %35, %c1_i32_16 : i32
    %c32_i32 = arith.constant 32 : i32
    %37 = arith.muli %36, %c32_i32 : i32
    %c8_i32 = arith.constant 8 : i32
    %38 = arith.cmpi sgt, %37, %c8_i32 : i32
    %39 = arith.extui %38 : i1 to i32
    %c0_i32_17 = arith.constant 0 : i32
    %40 = arith.cmpi ne, %39, %c0_i32_17 : i32
    scf.if %40 {
      %c8_i32_19 = arith.constant 8 : i32
      %44 = arith.muli %35, %c8_i32_19 : i32
      %45 = tpu.iota {dimensions = array<i32: 0>} : vector<8x4xi32>
      %46 = vector.broadcast %44 : i32 to vector<8x4xi32>
      %47 = arith.addi %46, %45 : vector<8x4xi32>
      %c4_i32 = arith.constant 4 : i32
      %48 = vector.broadcast %c4_i32 : i32 to vector<8x4xi32>
      %49 = arith.muli %47, %48 : vector<8x4xi32>
      %50 = tpu.iota {dimensions = array<i32: 1>} : vector<8x4xi32>
      %51 = arith.addi %49, %50 : vector<8x4xi32>
      %c8_i32_20 = arith.constant 8 : i32
      %52 = vector.broadcast %c8_i32_20 : i32 to vector<8x4xi32>
      %53 = arith.cmpi slt, %51, %52 : vector<8x4xi32>
      %cst_21 = arith.constant 0.000000e+00 : f32
      %54 = vector.broadcast %cst_21 : f32 to vector<8x4xf32>
      %55 = arith.select %53, %33, %54 : vector<8x4xi1>, vector<8x4xf32>
      %c0_22 = arith.constant 0 : index
      %c0_23 = arith.constant 0 : index
      %c0_24 = arith.constant 0 : index
      %56 = vector.load %arg6[%c0_22, %c0_23, %c0_24] : memref<1x1x1xf32, #tpu.memory_space<vmem>>, vector<1x1x1xf32>
      %57 = vector.shape_cast %55 : vector<8x4xf32> to vector<1x8x4xf32>
      %cst_25 = arith.constant dense<0.000000e+00> : vector<1xf32>
      %58 = vector.multi_reduction <add>, %57, %cst_25 [1, 2] : vector<1x8x4xf32> to vector<1xf32>
      %59 = vector.shape_cast %58 : vector<1xf32> to vector<1x1x1xf32>
      %60 = vector.extract %59[0, 0, 0] : f32 from vector<1x1x1xf32>
      %61 = vector.broadcast %60 : f32 to vector<1x1x1xf32>
      %62 = arith.addf %56, %61 : vector<1x1x1xf32>
      %c0_26 = arith.constant 0 : index
      %c0_27 = arith.constant 0 : index
      %c0_28 = arith.constant 0 : index
      %63 = vector.load %arg6[%c0_26, %c0_27, %c0_28] : memref<1x1x1xf32, #tpu.memory_space<vmem>>, vector<1x1x1xf32>
      tpu.vector_store %arg6[%c0_26, %c0_27, %c0_28], %62 {strides = array<i32>} : memref<1x1x1xf32, #tpu.memory_space<vmem>>, vector<1x1x1xf32>,
    } else {
    }
    %true = arith.constant true
    %41 = arith.xori %38, %true : i1
    %42 = arith.extui %41 : i1 to i32
    %c0_i32_18 = arith.constant 0 : i32
    %43 = arith.cmpi ne, %42, %c0_i32_18 : i32
    scf.if %43 {
      %c0_19 = arith.constant 0 : index
      %c0_20 = arith.constant 0 : index
      %c0_21 = arith.constant 0 : index
      %44 = vector.load %arg6[%c0_19, %c0_20, %c0_21] : memref<1x1x1xf32, #tpu.memory_space<vmem>>, vector<1x1x1xf32>
      %45 = vector.shape_cast %33 : vector<8x4xf32> to vector<1x8x4xf32>
      %cst_22 = arith.constant dense<0.000000e+00> : vector<1xf32>
      %46 = vector.multi_reduction <add>, %45, %cst_22 [1, 2] : vector<1x8x4xf32> to vector<1xf32>
      %47 = vector.shape_cast %46 : vector<1xf32> to vector<1x1x1xf32>
      %48 = vector.extract %47[0, 0, 0] : f32 from vector<1x1x1xf32>
      %49 = vector.broadcast %48 : f32 to vector<1x1x1xf32>
      %50 = arith.addf %44, %49 : vector<1x1x1xf32>
      %c0_23 = arith.constant 0 : index
      %c0_24 = arith.constant 0 : index
      %c0_25 = arith.constant 0 : index
      %51 = vector.load %arg6[%c0_23, %c0_24, %c0_25] : memref<1x1x1xf32, #tpu.memory_space<vmem>>, vector<1x1x1xf32>
      tpu.vector_store %arg6[%c0_23, %c0_24, %c0_25], %50 {strides = array<i32>} : memref<1x1x1xf32, #tpu.memory_space<vmem>>, vector<1x1x1xf32>,
    } else {
    }
    return
  }
  func.func @transform_0(%arg0: i32, %arg1: i32) -> (i32, i32) {
    %c1_i32 = arith.constant 1 : i32
    %0 = arith.muli %arg0, %c1_i32 : i32
    %1 = arith.addi %0, %arg1 : i32
    %c0_i32 = arith.constant 0 : i32
    %2 = arith.minsi %1, %c0_i32 : i32
    %c0_i32_0 = arith.constant 0 : i32
    %c0_i32_1 = arith.constant 0 : i32
    return %2, %c0_i32_0 : i32, i32
  }
  func.func @transform_1(%arg0: i32, %arg1: i32) -> (i32, i32) {
    %c1_i32 = arith.constant 1 : i32
    %0 = arith.muli %arg0, %c1_i32 : i32
    %1 = arith.addi %0, %arg1 : i32
    %c0_i32 = arith.constant 0 : i32
    %2 = arith.minsi %1, %c0_i32 : i32
    %c0_i32_0 = arith.constant 0 : i32
    %c0_i32_1 = arith.constant 0 : i32
    return %2, %c0_i32_0 : i32, i32
  }
  func.func @transform_2(%arg0: i32, %arg1: i32) -> (i32, i32) {
    %c1_i32 = arith.constant 1 : i32
    %0 = arith.muli %arg0, %c1_i32 : i32
    %1 = arith.addi %0, %arg1 : i32
    %c0_i32 = arith.constant 0 : i32
    %2 = arith.minsi %1, %c0_i32 : i32
    %c0_i32_0 = arith.constant 0 : i32
    %c0_i32_1 = arith.constant 0 : i32
    return %2, %c0_i32_0 : i32, i32
  }
  func.func @transform_3(%arg0: i32, %arg1: i32) -> (i32, i32) {
    %c0_i32 = arith.constant 0 : i32
    %c0_i32_0 = arith.constant 0 : i32
    %c0_i32_1 = arith.constant 0 : i32
    return %c0_i32, %c0_i32_0 : i32, i32
  }
  func.func @transform_4(%arg0: i32, %arg1: i32) -> (i32, i32, i32) {
    %c0_i32 = arith.constant 0 : i32
    %c0_i32_0 = arith.constant 0 : i32
    %c0_i32_1 = arith.constant 0 : i32
    return %arg0, %c0_i32, %c0_i32_0 : i32, i32, i32
  }
}

</mosaic_0001>

<llo_original>
// kernel: tpu_custom_call.1
$region0: #{tpu_custom_call.1}
  #allocation0 [shape = 'u32[]', space=smem, size = 0x4, offset = 0x4, fixed_abs, tag = 'smem constant byte address 0x4 - core index']
  #allocation1 [shape = 'u32[144,128]{1,0:T(1,128)}', space=vmem, size = 0x12000, scoped, tag = 'internal scratch']
  %s0 = inlined_call_operand.vmem [shape: f32[2,128], index: 0, kind: input, shape index: {}]
  %s1 = inlined_call_operand.vmem [shape: f32[2,128], index: 1, kind: input, shape index: {}]
  %s2 = inlined_call_operand.vmem [shape: f32[2,4], index: 2, kind: input, shape index: {}]
  %s3 = inlined_call_operand.vmem [shape: f32[128,4], index: 3, kind: input, shape index: {}]
  %s4 = inlined_call_operand.hbm [shape: f32[1,1,1], index: 4, kind: output, shape index: {}]
  %s5 = sld [smem:[#allocation0]]
  $region38: #{tpu_custom_call.1} parent=0
    _
  %s7 = ssub.s32 1, %s5
  %s8 = scalar_select 0, %s7, %s5
  $region1: #{tpu_custom_call.1} parent=0
    #allocation2 [shape = 'u8[512]{0}', space=vmem, size = 0x400, scoped, tag = 'output window, operand 0, single buffered']
    #allocation3 [shape = 's32[1]{0}', space=sflag, size = 0x4, scoped, tag = 'scoped memory for tpu_custom_call.1']
    %9 = vsyncpa [#allocation3], 0
    // Predicated region
    $region2: #{tpu_custom_call.1} parent=1 // pred_check
      _
    $region3: #{tpu_custom_call.1} parent=1 // pred_check_branch
      %11 = sbr.rel (0) target = $region5
    $region4: #{tpu_custom_call.1} parent=1 // pred_region
      %s12 = sadd.s32 0, 0
      %p13 = scmp.lt.s32.totalorder %s12, 0
      %s14 = scalar_select %p13, %s12, 0
      %s15 = smul.u32 4, %s14
      %s16 = ssub.s32 1, %s15
      %s17 = smul.u32 32, %s16
      %p18 = scmp.lt.s32.totalorder %s15, 0
      %s19 = scalar_select %p18, %s15, 0
      %s20 = smul.addr %s19, 2
      %s21 = scalar_lea.vmem %s0, %s20
      %s22 = sadd.s32 0, 0
      %p23 = scmp.lt.s32.totalorder %s22, 0
      %s24 = scalar_select %p23, %s22, 0
      %s25 = smul.u32 4, %s24
      %s26 = ssub.s32 1, %s25
      %s27 = smul.u32 32, %s26
    $region5: #{tpu_custom_call.1} parent=1 // pred_fallthru
      _
    // Predicated region
    $region6: #{tpu_custom_call.1} parent=1 // pred_check
      _
    $region7: #{tpu_custom_call.1} parent=1 // pred_check_branch
      %29 = sbr.rel (0) target = $region9
    $region8: #{tpu_custom_call.1} parent=1 // pred_region
      %s30 = sadd.s32 0, 0
      %p31 = scmp.lt.s32.totalorder %s30, 0
      %s32 = scalar_select %p31, %s30, 0
      %s33 = smul.u32 4, %s32
      %s34 = ssub.s32 1, %s33
      %s35 = smul.u32 32, %s34
      %p36 = scmp.lt.s32.totalorder %s33, 0
      %s37 = scalar_select %p36, %s33, 0
      %s38 = smul.addr %s37, 2
      %s39 = scalar_lea.vmem %s1, %s38
      %s40 = sadd.s32 0, 0
      %p41 = scmp.lt.s32.totalorder %s40, 0
      %s42 = scalar_select %p41, %s40, 0
      %s43 = smul.u32 4, %s42
      %s44 = ssub.s32 1, %s43
      %s45 = smul.u32 32, %s44
    $region9: #{tpu_custom_call.1} parent=1 // pred_fallthru
      _
    // Predicated region
    $region10: #{tpu_custom_call.1} parent=1 // pred_check
      _
    $region11: #{tpu_custom_call.1} parent=1 // pred_check_branch
      %47 = sbr.rel (0) target = $region13
    $region12: #{tpu_custom_call.1} parent=1 // pred_region
      %s48 = sadd.s32 0, 0
      %p49 = scmp.lt.s32.totalorder %s48, 0
      %s50 = scalar_select %p49, %s48, 0
      %s51 = smul.u32 4, %s50
      %s52 = ssub.s32 1, %s51
      %s53 = smul.u32 32, %s52
      %p54 = scmp.lt.s32.totalorder %s51, 0
      %s55 = scalar_select %p54, %s51, 0
      %s56 = smul.addr %s55, 2
      %s57 = scalar_lea.vmem %s2, %s56
      %s58 = sadd.s32 0, 0
      %p59 = scmp.lt.s32.totalorder %s58, 0
      %s60 = scalar_select %p59, %s58, 0
      %s61 = smul.u32 4, %s60
      %s62 = ssub.s32 1, %s61
      %s63 = smul.u32 32, %s62
    $region13: #{tpu_custom_call.1} parent=1 // pred_fallthru
      _
    // Predicated region
    $region14: #{tpu_custom_call.1} parent=1 // pred_check
      _
    $region15: #{tpu_custom_call.1} parent=1 // pred_check_branch
      %65 = sbr.rel (0) target = $region17
    $region16: #{tpu_custom_call.1} parent=1 // pred_region
      _
    $region17: #{tpu_custom_call.1} parent=1 // pred_fallthru
      _
    %s66 = sadd.s32 0, 0
    %p67 = scmp.lt.s32.totalorder %s66, 0
    %s68 = scalar_select %p67, %s66, 0
    %s69 = smul.u32 4, %s68
    %s70 = ssub.s32 1, %s69
    %s71 = smul.u32 32, %s70
    %p72 = scmp.lt.s32.totalorder %s69, 0
    %s73 = scalar_select %p72, %s69, 0
    %s74 = smul.addr %s73, 2
    %s75 = scalar_lea.vmem %s0, %s74
    %s76 = sadd.s32 0, 0
    %p77 = scmp.lt.s32.totalorder %s76, 0
    %s78 = scalar_select %p77, %s76, 0
    %s79 = smul.u32 4, %s78
    %s80 = ssub.s32 1, %s79
    %s81 = smul.u32 32, %s80
    %p82 = scmp.lt.s32.totalorder %s79, 0
    %s83 = scalar_select %p82, %s79, 0
    %s84 = smul.addr %s83, 2
    %s85 = scalar_lea.vmem %s1, %s84
    %s86 = sadd.s32 0, 0
    %p87 = scmp.lt.s32.totalorder %s86, 0
    %s88 = scalar_select %p87, %s86, 0
    %s89 = smul.u32 4, %s88
    %s90 = ssub.s32 1, %s89
    %s91 = smul.u32 32, %s90
    %p92 = scmp.lt.s32.totalorder %s89, 0
    %s93 = scalar_select %p92, %s89, 0
    %s94 = smul.addr %s93, 2
    %s95 = scalar_lea.vmem %s2, %s94
    %s96 = sadd.s32 0, 0
    %p97 = scmp.lt.s32.totalorder %s96, 0
    %s98 = scalar_select %p97, %s96, 0
    %s99 = smul.u32 4, %s98
    %s100 = ssub.s32 1, %s99
    %s101 = smul.u32 32, %s100
    %p102 = scmp.lt.s32.totalorder %s99, 0
    %s103 = scalar_select %p102, %s99, 0
    %s104 = smul.addr %s103, 2
    %s105 = scalar_lea.vmem %s0, %s104
    %s106 = sadd.s32 0, 0
    %p107 = scmp.lt.s32.totalorder %s106, 0
    %s108 = scalar_select %p107, %s106, 0
    %s109 = smul.u32 4, %s108
    %s110 = ssub.s32 1, %s109
    %s111 = smul.u32 32, %s110
    %s112 = sadd.s32 0, 0
    %p113 = scmp.lt.s32.totalorder %s112, 0
    %s114 = scalar_select %p113, %s112, 0
    %s115 = smul.u32 4, %s114
    %s116 = ssub.s32 1, %s115
    %s117 = smul.u32 32, %s116
    %p118 = scmp.lt.s32.totalorder %s115, 0
    %s119 = scalar_select %p118, %s115, 0
    %s120 = smul.addr %s119, 2
    %s121 = scalar_lea.vmem %s1, %s120
    %s122 = sadd.s32 0, 0
    %p123 = scmp.lt.s32.totalorder %s122, 0
    %s124 = scalar_select %p123, %s122, 0
    %s125 = smul.u32 4, %s124
    %s126 = ssub.s32 1, %s125
    %s127 = smul.u32 32, %s126
    %s128 = sadd.s32 0, 0
    %p129 = scmp.lt.s32.totalorder %s128, 0
    %s130 = scalar_select %p129, %s128, 0
    %s131 = smul.u32 4, %s130
    %s132 = ssub.s32 1, %s131
    %s133 = smul.u32 32, %s132
    %p134 = scmp.lt.s32.totalorder %s131, 0
    %s135 = scalar_select %p134, %s131, 0
    %s136 = smul.addr %s135, 2
    %s137 = scalar_lea.vmem %s2, %s136
    %s138 = sadd.s32 0, 0
    %p139 = scmp.lt.s32.totalorder %s138, 0
    %s140 = scalar_select %p139, %s138, 0
    %s141 = smul.u32 4, %s140
    %s142 = ssub.s32 1, %s141
    %s143 = smul.u32 32, %s142
    %p144 = scmp.eq.s32.totalorder 0, 0
    // Predicated region
    $region18: #{tpu_custom_call.1} parent=1 // pred_check
      %p145 = pneg %p144
    $region19: #{tpu_custom_call.1} parent=1 // pred_check_branch
      %147 = sbr.rel (%p145) target = $region21
    $region20: #{tpu_custom_call.1} parent=1 // pred_region
      %vm148 = vcmask 0
      %149 = vst.msk [vmem:[#allocation2] sm:$0x1] %vm148, 0.0
    $region21: #{tpu_custom_call.1} parent=1 // pred_fallthru
      _
    %v150 = vld [vmem:[%s105] sm:$0xff]
    %v151 = vld [vmem:[%s121] sm:$0xff]
    %v152 = vld [vmem:[%s137] sm:$0xff]
    %v153 = vld [vmem:[%s3] sm:$0xff]
    %v154 = vld [vmem:[%s3 + $0x8] sm:$0xff]
    %v155 = vld [vmem:[%s3 + $0x10] sm:$0xff]
    %v156 = vld [vmem:[%s3 + $0x18] sm:$0xff]
    %v157 = vld [vmem:[%s3 + $0x20] sm:$0xff]
    %v158 = vld [vmem:[%s3 + $0x28] sm:$0xff]
    %v159 = vld [vmem:[%s3 + $0x30] sm:$0xff]
    %v160 = vld [vmem:[%s3 + $0x38] sm:$0xff]
    %v161 = vld [vmem:[%s3 + $0x40] sm:$0xff]
    %v162 = vld [vmem:[%s3 + $0x48] sm:$0xff]
    %v163 = vld [vmem:[%s3 + $0x50] sm:$0xff]
    %v164 = vld [vmem:[%s3 + $0x58] sm:$0xff]
    %v165 = vld [vmem:[%s3 + $0x60] sm:$0xff]
    %v166 = vld [vmem:[%s3 + $0x68] sm:$0xff]
    %v167 = vld [vmem:[%s3 + $0x70] sm:$0xff]
    %v168 = vld [vmem:[%s3 + $0x78] sm:$0xff]
    %v169 = vmul.f32 %v150, %v151
    %170 = vmatprep.subr.mxu0 0.0
    %v171 = vand.u32 %v168, 4294901760
    %172 = vmatpush1.msra.mxu0 %v171
    %173 = vmatprep.subr.mxu0 0.0
    %v174 = vand.u32 %v167, 4294901760
    %175 = vmatpush1.msra.mxu0 %v174
    %176 = vmatprep.subr.mxu0 0.0
    %v177 = vand.u32 %v166, 4294901760
    %178 = vmatpush1.msra.mxu0 %v177
    %179 = vmatprep.subr.mxu0 0.0
    %v180 = vand.u32 %v165, 4294901760
    %181 = vmatpush1.msra.mxu0 %v180
    %182 = vmatprep.subr.mxu0 0.0
    %v183 = vand.u32 %v164, 4294901760
    %184 = vmatpush1.msra.mxu0 %v183
    %185 = vmatprep.subr.mxu0 0.0
    %v186 = vand.u32 %v163, 4294901760
    %187 = vmatpush1.msra.mxu0 %v186
    %188 = vmatprep.subr.mxu0 0.0
    %v189 = vand.u32 %v162, 4294901760
    %190 = vmatpush1.msra.mxu0 %v189
    %191 = vmatprep.subr.mxu0 0.0
    %v192 = vand.u32 %v161, 4294901760
    %193 = vmatpush1.msra.mxu0 %v192
    %194 = vmatprep.subr.mxu0 0.0
    %v195 = vand.u32 %v160, 4294901760
    %196 = vmatpush1.msra.mxu0 %v195
    %197 = vmatprep.subr.mxu0 0.0
    %v198 = vand.u32 %v159, 4294901760
    %199 = vmatpush1.msra.mxu0 %v198
    %200 = vmatprep.subr.mxu0 0.0
    %v201 = vand.u32 %v158, 4294901760
    %202 = vmatpush1.msra.mxu0 %v201
    %203 = vmatprep.subr.mxu0 0.0
    %v204 = vand.u32 %v157, 4294901760
    %205 = vmatpush1.msra.mxu0 %v204
    %206 = vmatprep.subr.mxu0 0.0
    %v207 = vand.u32 %v156, 4294901760
    %208 = vmatpush1.msra.mxu0 %v207
    %209 = vmatprep.subr.mxu0 0.0
    %v210 = vand.u32 %v155, 4294901760
    %211 = vmatpush1.msra.mxu0 %v210
    %212 = vmatprep.subr.mxu0 0.0
    %v213 = vand.u32 %v154, 4294901760
    %214 = vmatpush1.msra.mxu0 %v213
    %215 = vmatprep.subr.mxu0 0.0
    %v216 = vand.u32 %v153, 4294901760
    %217 = vmatpush1.msra.mxu0 %v216
    %218 = vmatprep.subr.mxu0 0.0
    %219 = vmatpush2.msra.mxu0 0.0
    %220 = vmatprep.subr.mxu0 0.0
    %221 = vmatpush2.msra.mxu0 0.0
    %222 = vmatprep.subr.mxu0 0.0
    %223 = vmatpush2.msra.mxu0 0.0
    %224 = vmatprep.subr.mxu0 0.0
    %225 = vmatpush2.msra.mxu0 0.0
    %226 = vmatprep.subr.mxu0 0.0
    %227 = vmatpush2.msra.mxu0 0.0
    %228 = vmatprep.subr.mxu0 0.0
    %229 = vmatpush2.msra.mxu0 0.0
    %230 = vmatprep.subr.mxu0 0.0
    %231 = vmatpush2.msra.mxu0 0.0
    %232 = vmatprep.subr.mxu0 0.0
    %233 = vmatpush2.msra.mxu0 0.0
    %234 = vmatprep.subr.mxu0 0.0
    %235 = vmatpush2.msra.mxu0 0.0
    %236 = vmatprep.subr.mxu0 0.0
    %237 = vmatpush2.msra.mxu0 0.0
    %238 = vmatprep.subr.mxu0 0.0
    %239 = vmatpush2.msra.mxu0 0.0
    %240 = vmatprep.subr.mxu0 0.0
    %241 = vmatpush2.msra.mxu0 0.0
    %242 = vmatprep.subr.mxu0 0.0
    %243 = vmatpush2.msra.mxu0 0.0
    %244 = vmatprep.subr.mxu0 0.0
    %245 = vmatpush2.msra.mxu0 0.0
    %246 = vmatprep.subr.mxu0 0.0
    %247 = vmatpush2.msra.mxu0 0.0
    %248 = vmatprep.subr.mxu0 0.0
    %249 = vmatpush2.msra.mxu0 0.0
    %250 = vmatprep.mubr.f32.mxu0 0.0
    %v251 = vand.u32 %v169, 4294901760
    %v252 = vsub.f32 %v169, %v251
    %v253 = vand.u32 %v252, 4294901760
    %v254 = vsub.f32 %v252, %v253
    %v255 = vand.u32 %v254, 4294901760
    %256 = vmatmul.mubr.f32.gmra.mxu0 %v255
    %v257 = vpop.f32.mrf.mxu0
    %v258 = vadd.f32 0.0, %v257
    %v259 = vpop.f32.mrf.mxu0
    %260 = vdwg.mxu0
    %261 = vmatprep.subr.mxu0 0.0
    %v262 = vand.u32 %v168, 4294901760
    %v263 = vsub.f32 %v168, %v262
    %v264 = vand.u32 %v263, 4294901760
    %v265 = vsub.f32 %v263, %v264
    %v266 = vand.u32 %v265, 4294901760
    %267 = vmatpush1.msra.mxu0 %v266
    %268 = vmatprep.subr.mxu0 0.0
    %v269 = vand.u32 %v167, 4294901760
    %v270 = vsub.f32 %v167, %v269
    %v271 = vand.u32 %v270, 4294901760
    %v272 = vsub.f32 %v270, %v271
    %v273 = vand.u32 %v272, 4294901760
    %274 = vmatpush1.msra.mxu0 %v273
    %275 = vmatprep.subr.mxu0 0.0
    %v276 = vand.u32 %v166, 4294901760
    %v277 = vsub.f32 %v166, %v276
    %v278 = vand.u32 %v277, 4294901760
    %v279 = vsub.f32 %v277, %v278
    %v280 = vand.u32 %v279, 4294901760
    %281 = vmatpush1.msra.mxu0 %v280
    %282 = vmatprep.subr.mxu0 0.0
    %v283 = vand.u32 %v165, 4294901760
    %v284 = vsub.f32 %v165, %v283
    %v285 = vand.u32 %v284, 4294901760
    %v286 = vsub.f32 %v284, %v285
    %v287 = vand.u32 %v286, 4294901760
    %288 = vmatpush1.msra.mxu0 %v287
    %289 = vmatprep.subr.mxu0 0.0
    %v290 = vand.u32 %v164, 4294901760
    %v291 = vsub.f32 %v164, %v290
    %v292 = vand.u32 %v291, 4294901760
    %v293 = vsub.f32 %v291, %v292
    %v294 = vand.u32 %v293, 4294901760
    %295 = vmatpush1.msra.mxu0 %v294
    %296 = vmatprep.subr.mxu0 0.0
    %v297 = vand.u32 %v163, 4294901760
    %v298 = vsub.f32 %v163, %v297
    %v299 = vand.u32 %v298, 4294901760
    %v300 = vsub.f32 %v298, %v299
    %v301 = vand.u32 %v300, 4294901760
    %302 = vmatpush1.msra.mxu0 %v301
    %303 = vmatprep.subr.mxu0 0.0
    %v304 = vand.u32 %v162, 4294901760
    %v305 = vsub.f32 %v162, %v304
    %v306 = vand.u32 %v305, 4294901760
    %v307 = vsub.f32 %v305, %v306
    %v308 = vand.u32 %v307, 4294901760
    %309 = vmatpush1.msra.mxu0 %v308
    %310 = vmatprep.subr.mxu0 0.0
    %v311 = vand.u32 %v161, 4294901760
    %v312 = vsub.f32 %v161, %v311
    %v313 = vand.u32 %v312, 4294901760
    %v314 = vsub.f32 %v312, %v313
    %v315 = vand.u32 %v314, 4294901760
    %316 = vmatpush1.msra.mxu0 %v315
    %317 = vmatprep.subr.mxu0 0.0
    %v318 = vand.u32 %v160, 4294901760
    %v319 = vsub.f32 %v160, %v318
    %v320 = vand.u32 %v319, 4294901760
    %v321 = vsub.f32 %v319, %v320
    %v322 = vand.u32 %v321, 4294901760
    %323 = vmatpush1.msra.mxu0 %v322
    %324 = vmatprep.subr.mxu0 0.0
    %v325 = vand.u32 %v159, 4294901760
    %v326 = vsub.f32 %v159, %v325
    %v327 = vand.u32 %v326, 4294901760
    %v328 = vsub.f32 %v326, %v327
    %v329 = vand.u32 %v328, 4294901760
    %330 = vmatpush1.msra.mxu0 %v329
    %331 = vmatprep.subr.mxu0 0.0
    %v332 = vand.u32 %v158, 4294901760
    %v333 = vsub.f32 %v158, %v332
    %v334 = vand.u32 %v333, 4294901760
    %v335 = vsub.f32 %v333, %v334
    %v336 = vand.u32 %v335, 4294901760
    %337 = vmatpush1.msra.mxu0 %v336
    %338 = vmatprep.subr.mxu0 0.0
    %v339 = vand.u32 %v157, 4294901760
    %v340 = vsub.f32 %v157, %v339
    %v341 = vand.u32 %v340, 4294901760
    %v342 = vsub.f32 %v340, %v341
    %v343 = vand.u32 %v342, 4294901760
    %344 = vmatpush1.msra.mxu0 %v343
    %345 = vmatprep.subr.mxu0 0.0
    %v346 = vand.u32 %v156, 4294901760
    %v347 = vsub.f32 %v156, %v346
    %v348 = vand.u32 %v347, 4294901760
    %v349 = vsub.f32 %v347, %v348
    %v350 = vand.u32 %v349, 4294901760
    %351 = vmatpush1.msra.mxu0 %v350
    %352 = vmatprep.subr.mxu0 0.0
    %v353 = vand.u32 %v155, 4294901760
    %v354 = vsub.f32 %v155, %v353
    %v355 = vand.u32 %v354, 4294901760
    %v356 = vsub.f32 %v354, %v355
    %v357 = vand.u32 %v356, 4294901760
    %358 = vmatpush1.msra.mxu0 %v357
    %359 = vmatprep.subr.mxu0 0.0
    %v360 = vand.u32 %v154, 4294901760
    %v361 = vsub.f32 %v154, %v360
    %v362 = vand.u32 %v361, 4294901760
    %v363 = vsub.f32 %v361, %v362
    %v364 = vand.u32 %v363, 4294901760
    %365 = vmatpush1.msra.mxu0 %v364
    %366 = vmatprep.subr.mxu0 0.0
    %v367 = vand.u32 %v153, 4294901760
    %v368 = vsub.f32 %v153, %v367
    %v369 = vand.u32 %v368, 4294901760
    %v370 = vsub.f32 %v368, %v369
    %v371 = vand.u32 %v370, 4294901760
    %372 = vmatpush1.msra.mxu0 %v371
    %373 = vmatprep.subr.mxu0 0.0
    %374 = vmatpush2.msra.mxu0 0.0
    %375 = vmatprep.subr.mxu0 0.0
    %376 = vmatpush2.msra.mxu0 0.0
    %377 = vmatprep.subr.mxu0 0.0
    %378 = vmatpush2.msra.mxu0 0.0
    %379 = vmatprep.subr.mxu0 0.0
    %380 = vmatpush2.msra.mxu0 0.0
    %381 = vmatprep.subr.mxu0 0.0
    %382 = vmatpush2.msra.mxu0 0.0
    %383 = vmatprep.subr.mxu0 0.0
    %384 = vmatpush2.msra.mxu0 0.0
    %385 = vmatprep.subr.mxu0 0.0
    %386 = vmatpush2.msra.mxu0 0.0
    %387 = vmatprep.subr.mxu0 0.0
    %388 = vmatpush2.msra.mxu0 0.0
    %389 = vmatprep.subr.mxu0 0.0
    %390 = vmatpush2.msra.mxu0 0.0
    %391 = vmatprep.subr.mxu0 0.0
    %392 = vmatpush2.msra.mxu0 0.0
    %393 = vmatprep.subr.mxu0 0.0
    %394 = vmatpush2.msra.mxu0 0.0
    %395 = vmatprep.subr.mxu0 0.0
    %396 = vmatpush2.msra.mxu0 0.0
    %397 = vmatprep.subr.mxu0 0.0
    %398 = vmatpush2.msra.mxu0 0.0
    %399 = vmatprep.subr.mxu0 0.0
    %400 = vmatpush2.msra.mxu0 0.0
    %401 = vmatprep.subr.mxu0 0.0
    %402 = vmatpush2.msra.mxu0 0.0
    %403 = vmatprep.subr.mxu0 0.0
    %404 = vmatpush2.msra.mxu0 0.0
    %405 = vmatprep.mubr.f32.mxu0 0.0
    %v406 = vand.u32 %v169, 4294901760
    %407 = vmatmul.mubr.f32.gmra.mxu0 %v406
    %v408 = vpop.f32.mrf.mxu0
    %v409 = vadd.f32 %v258, %v408
    %v410 = vpop.f32.mrf.mxu0
    %411 = vdwg.mxu0
    %412 = vmatprep.subr.mxu0 0.0
    %v413 = vand.u32 %v168, 4294901760
    %v414 = vsub.f32 %v168, %v413
    %415 = vmatpush1.msra.mxu0 %v414
    %416 = vmatprep.subr.mxu0 0.0
    %v417 = vand.u32 %v167, 4294901760
    %v418 = vsub.f32 %v167, %v417
    %419 = vmatpush1.msra.mxu0 %v418
    %420 = vmatprep.subr.mxu0 0.0
    %v421 = vand.u32 %v166, 4294901760
    %v422 = vsub.f32 %v166, %v421
    %423 = vmatpush1.msra.mxu0 %v422
    %424 = vmatprep.subr.mxu0 0.0
    %v425 = vand.u32 %v165, 4294901760
    %v426 = vsub.f32 %v165, %v425
    %427 = vmatpush1.msra.mxu0 %v426
    %428 = vmatprep.subr.mxu0 0.0
    %v429 = vand.u32 %v164, 4294901760
    %v430 = vsub.f32 %v164, %v429
    %431 = vmatpush1.msra.mxu0 %v430
    %432 = vmatprep.subr.mxu0 0.0
    %v433 = vand.u32 %v163, 4294901760
    %v434 = vsub.f32 %v163, %v433
    %435 = vmatpush1.msra.mxu0 %v434
    %436 = vmatprep.subr.mxu0 0.0
    %v437 = vand.u32 %v162, 4294901760
    %v438 = vsub.f32 %v162, %v437
    %439 = vmatpush1.msra.mxu0 %v438
    %440 = vmatprep.subr.mxu0 0.0
    %v441 = vand.u32 %v161, 4294901760
    %v442 = vsub.f32 %v161, %v441
    %443 = vmatpush1.msra.mxu0 %v442
    %444 = vmatprep.subr.mxu0 0.0
    %v445 = vand.u32 %v160, 4294901760
    %v446 = vsub.f32 %v160, %v445
    %447 = vmatpush1.msra.mxu0 %v446
    %448 = vmatprep.subr.mxu0 0.0
    %v449 = vand.u32 %v159, 4294901760
    %v450 = vsub.f32 %v159, %v449
    %451 = vmatpush1.msra.mxu0 %v450
    %452 = vmatprep.subr.mxu0 0.0
    %v453 = vand.u32 %v158, 4294901760
    %v454 = vsub.f32 %v158, %v453
    %455 = vmatpush1.msra.mxu0 %v454
    %456 = vmatprep.subr.mxu0 0.0
    %v457 = vand.u32 %v157, 4294901760
    %v458 = vsub.f32 %v157, %v457
    %459 = vmatpush1.msra.mxu0 %v458
    %460 = vmatprep.subr.mxu0 0.0
    %v461 = vand.u32 %v156, 4294901760
    %v462 = vsub.f32 %v156, %v461
    %463 = vmatpush1.msra.mxu0 %v462
    %464 = vmatprep.subr.mxu0 0.0
    %v465 = vand.u32 %v155, 4294901760
    %v466 = vsub.f32 %v155, %v465
    %467 = vmatpush1.msra.mxu0 %v466
    %468 = vmatprep.subr.mxu0 0.0
    %v469 = vand.u32 %v154, 4294901760
    %v470 = vsub.f32 %v154, %v469
    %471 = vmatpush1.msra.mxu0 %v470
    %472 = vmatprep.subr.mxu0 0.0
    %v473 = vand.u32 %v153, 4294901760
    %v474 = vsub.f32 %v153, %v473
    %475 = vmatpush1.msra.mxu0 %v474
    %476 = vmatprep.subr.mxu0 0.0
    %477 = vmatpush2.msra.mxu0 0.0
    %478 = vmatprep.subr.mxu0 0.0
    %479 = vmatpush2.msra.mxu0 0.0
    %480 = vmatprep.subr.mxu0 0.0
    %481 = vmatpush2.msra.mxu0 0.0
    %482 = vmatprep.subr.mxu0 0.0
    %483 = vmatpush2.msra.mxu0 0.0
    %484 = vmatprep.subr.mxu0 0.0
    %485 = vmatpush2.msra.mxu0 0.0
    %486 = vmatprep.subr.mxu0 0.0
    %487 = vmatpush2.msra.mxu0 0.0
    %488 = vmatprep.subr.mxu0 0.0
    %489 = vmatpush2.msra.mxu0 0.0
    %490 = vmatprep.subr.mxu0 0.0
    %491 = vmatpush2.msra.mxu0 0.0
    %492 = vmatprep.subr.mxu0 0.0
    %493 = vmatpush2.msra.mxu0 0.0
    %494 = vmatprep.subr.mxu0 0.0
    %495 = vmatpush2.msra.mxu0 0.0
    %496 = vmatprep.subr.mxu0 0.0
    %497 = vmatpush2.msra.mxu0 0.0
    %498 = vmatprep.subr.mxu0 0.0
    %499 = vmatpush2.msra.mxu0 0.0
    %500 = vmatprep.subr.mxu0 0.0
    %501 = vmatpush2.msra.mxu0 0.0
    %502 = vmatprep.subr.mxu0 0.0
    %503 = vmatpush2.msra.mxu0 0.0
    %504 = vmatprep.subr.mxu0 0.0
    %505 = vmatpush2.msra.mxu0 0.0
    %506 = vmatprep.subr.mxu0 0.0
    %507 = vmatpush2.msra.mxu0 0.0
    %508 = vmatprep.mubr.f32.mxu0 0.0
    %v509 = vand.u32 %v169, 4294901760
    %v510 = vsub.f32 %v169, %v509
    %511 = vmatmul.mubr.f32.gmra.mxu0 %v510
    %v512 = vpop.f32.mrf.mxu0
    %v513 = vadd.f32 %v409, %v512
    %v514 = vpop.f32.mrf.mxu0
    %515 = vdwg.mxu0
    %516 = vmatprep.subr.mxu0 0.0
    %v517 = vand.u32 %v168, 4294901760
    %518 = vmatpush1.msra.mxu0 %v517
    %519 = vmatprep.subr.mxu0 0.0
    %v520 = vand.u32 %v167, 4294901760
    %521 = vmatpush1.msra.mxu0 %v520
    %522 = vmatprep.subr.mxu0 0.0
    %v523 = vand.u32 %v166, 4294901760
    %524 = vmatpush1.msra.mxu0 %v523
    %525 = vmatprep.subr.mxu0 0.0
    %v526 = vand.u32 %v165, 4294901760
    %527 = vmatpush1.msra.mxu0 %v526
    %528 = vmatprep.subr.mxu0 0.0
    %v529 = vand.u32 %v164, 4294901760
    %530 = vmatpush1.msra.mxu0 %v529
    %531 = vmatprep.subr.mxu0 0.0
    %v532 = vand.u32 %v163, 4294901760
    %533 = vmatpush1.msra.mxu0 %v532
    %534 = vmatprep.subr.mxu0 0.0
    %v535 = vand.u32 %v162, 4294901760
    %536 = vmatpush1.msra.mxu0 %v535
    %537 = vmatprep.subr.mxu0 0.0
    %v538 = vand.u32 %v161, 4294901760
    %539 = vmatpush1.msra.mxu0 %v538
    %540 = vmatprep.subr.mxu0 0.0
    %v541 = vand.u32 %v160, 4294901760
    %542 = vmatpush1.msra.mxu0 %v541
    %543 = vmatprep.subr.mxu0 0.0
    %v544 = vand.u32 %v159, 4294901760
    %545 = vmatpush1.msra.mxu0 %v544
    %546 = vmatprep.subr.mxu0 0.0
    %v547 = vand.u32 %v158, 4294901760
    %548 = vmatpush1.msra.mxu0 %v547
    %549 = vmatprep.subr.mxu0 0.0
    %v550 = vand.u32 %v157, 4294901760
    %551 = vmatpush1.msra.mxu0 %v550
    %552 = vmatprep.subr.mxu0 0.0
    %v553 = vand.u32 %v156, 4294901760
    %554 = vmatpush1.msra.mxu0 %v553
    %555 = vmatprep.subr.mxu0 0.0
    %v556 = vand.u32 %v155, 4294901760
    %557 = vmatpush1.msra.mxu0 %v556
    %558 = vmatprep.subr.mxu0 0.0
    %v559 = vand.u32 %v154, 4294901760
    %560 = vmatpush1.msra.mxu0 %v559
    %561 = vmatprep.subr.mxu0 0.0
    %v562 = vand.u32 %v153, 4294901760
    %563 = vmatpush1.msra.mxu0 %v562
    %564 = vmatprep.subr.mxu0 0.0
    %565 = vmatpush2.msra.mxu0 0.0
    %566 = vmatprep.subr.mxu0 0.0
    %567 = vmatpush2.msra.mxu0 0.0
    %568 = vmatprep.subr.mxu0 0.0
    %569 = vmatpush2.msra.mxu0 0.0
    %570 = vmatprep.subr.mxu0 0.0
    %571 = vmatpush2.msra.mxu0 0.0
    %572 = vmatprep.subr.mxu0 0.0
    %573 = vmatpush2.msra.mxu0 0.0
    %574 = vmatprep.subr.mxu0 0.0
    %575 = vmatpush2.msra.mxu0 0.0
    %576 = vmatprep.subr.mxu0 0.0
    %577 = vmatpush2.msra.mxu0 0.0
    %578 = vmatprep.subr.mxu0 0.0
    %579 = vmatpush2.msra.mxu0 0.0
    %580 = vmatprep.subr.mxu0 0.0
    %581 = vmatpush2.msra.mxu0 0.0
    %582 = vmatprep.subr.mxu0 0.0
    %583 = vmatpush2.msra.mxu0 0.0
    %584 = vmatprep.subr.mxu0 0.0
    %585 = vmatpush2.msra.mxu0 0.0
    %586 = vmatprep.subr.mxu0 0.0
    %587 = vmatpush2.msra.mxu0 0.0
    %588 = vmatprep.subr.mxu0 0.0
    %589 = vmatpush2.msra.mxu0 0.0
    %590 = vmatprep.subr.mxu0 0.0
    %591 = vmatpush2.msra.mxu0 0.0
    %592 = vmatprep.subr.mxu0 0.0
    %593 = vmatpush2.msra.mxu0 0.0
    %594 = vmatprep.subr.mxu0 0.0
    %595 = vmatpush2.msra.mxu0 0.0
    %596 = vmatprep.mubr.f32.mxu0 0.0
    %v597 = vand.u32 %v169, 4294901760
    %v598 = vsub.f32 %v169, %v597
    %v599 = vand.u32 %v598, 4294901760
    %600 = vmatmul.mubr.f32.gmra.mxu0 %v599
    %v601 = vpop.f32.mrf.mxu0
    %v602 = vadd.f32 %v513, %v601
    %v603 = vpop.f32.mrf.mxu0
    %604 = vdwg.mxu0
    %605 = vmatprep.subr.mxu0 0.0
    %v606 = vand.u32 %v168, 4294901760
    %v607 = vsub.f32 %v168, %v606
    %v608 = vand.u32 %v607, 4294901760
    %609 = vmatpush1.msra.mxu0 %v608
    %610 = vmatprep.subr.mxu0 0.0
    %v611 = vand.u32 %v167, 4294901760
    %v612 = vsub.f32 %v167, %v611
    %v613 = vand.u32 %v612, 4294901760
    %614 = vmatpush1.msra.mxu0 %v613
    %615 = vmatprep.subr.mxu0 0.0
    %v616 = vand.u32 %v166, 4294901760
    %v617 = vsub.f32 %v166, %v616
    %v618 = vand.u32 %v617, 4294901760
    %619 = vmatpush1.msra.mxu0 %v618
    %620 = vmatprep.subr.mxu0 0.0
    %v621 = vand.u32 %v165, 4294901760
    %v622 = vsub.f32 %v165, %v621
    %v623 = vand.u32 %v622, 4294901760
    %624 = vmatpush1.msra.mxu0 %v623
    %625 = vmatprep.subr.mxu0 0.0
    %v626 = vand.u32 %v164, 4294901760
    %v627 = vsub.f32 %v164, %v626
    %v628 = vand.u32 %v627, 4294901760
    %629 = vmatpush1.msra.mxu0 %v628
    %630 = vmatprep.subr.mxu0 0.0
    %v631 = vand.u32 %v163, 4294901760
    %v632 = vsub.f32 %v163, %v631
    %v633 = vand.u32 %v632, 4294901760
    %634 = vmatpush1.msra.mxu0 %v633
    %635 = vmatprep.subr.mxu0 0.0
    %v636 = vand.u32 %v162, 4294901760
    %v637 = vsub.f32 %v162, %v636
    %v638 = vand.u32 %v637, 4294901760
    %639 = vmatpush1.msra.mxu0 %v638
    %640 = vmatprep.subr.mxu0 0.0
    %v641 = vand.u32 %v161, 4294901760
    %v642 = vsub.f32 %v161, %v641
    %v643 = vand.u32 %v642, 4294901760
    %644 = vmatpush1.msra.mxu0 %v643
    %645 = vmatprep.subr.mxu0 0.0
    %v646 = vand.u32 %v160, 4294901760
    %v647 = vsub.f32 %v160, %v646
    %v648 = vand.u32 %v647, 4294901760
    %649 = vmatpush1.msra.mxu0 %v648
    %650 = vmatprep.subr.mxu0 0.0
    %v651 = vand.u32 %v159, 4294901760
    %v652 = vsub.f32 %v159, %v651
    %v653 = vand.u32 %v652, 4294901760
    %654 = vmatpush1.msra.mxu0 %v653
    %655 = vmatprep.subr.mxu0 0.0
    %v656 = vand.u32 %v158, 4294901760
    %v657 = vsub.f32 %v158, %v656
    %v658 = vand.u32 %v657, 4294901760
    %659 = vmatpush1.msra.mxu0 %v658
    %660 = vmatprep.subr.mxu0 0.0
    %v661 = vand.u32 %v157, 4294901760
    %v662 = vsub.f32 %v157, %v661
    %v663 = vand.u32 %v662, 4294901760
    %664 = vmatpush1.msra.mxu0 %v663
    %665 = vmatprep.subr.mxu0 0.0
    %v666 = vand.u32 %v156, 4294901760
    %v667 = vsub.f32 %v156, %v666
    %v668 = vand.u32 %v667, 4294901760
    %669 = vmatpush1.msra.mxu0 %v668
    %670 = vmatprep.subr.mxu0 0.0
    %v671 = vand.u32 %v155, 4294901760
    %v672 = vsub.f32 %v155, %v671
    %v673 = vand.u32 %v672, 4294901760
    %674 = vmatpush1.msra.mxu0 %v673
    %675 = vmatprep.subr.mxu0 0.0
    %v676 = vand.u32 %v154, 4294901760
    %v677 = vsub.f32 %v154, %v676
    %v678 = vand.u32 %v677, 4294901760
    %679 = vmatpush1.msra.mxu0 %v678
    %680 = vmatprep.subr.mxu0 0.0
    %v681 = vand.u32 %v153, 4294901760
    %v682 = vsub.f32 %v153, %v681
    %v683 = vand.u32 %v682, 4294901760
    %684 = vmatpush1.msra.mxu0 %v683
    %685 = vmatprep.subr.mxu0 0.0
    %686 = vmatpush2.msra.mxu0 0.0
    %687 = vmatprep.subr.mxu0 0.0
    %688 = vmatpush2.msra.mxu0 0.0
    %689 = vmatprep.subr.mxu0 0.0
    %690 = vmatpush2.msra.mxu0 0.0
    %691 = vmatprep.subr.mxu0 0.0
    %692 = vmatpush2.msra.mxu0 0.0
    %693 = vmatprep.subr.mxu0 0.0
    %694 = vmatpush2.msra.mxu0 0.0
    %695 = vmatprep.subr.mxu0 0.0
    %696 = vmatpush2.msra.mxu0 0.0
    %697 = vmatprep.subr.mxu0 0.0
    %698 = vmatpush2.msra.mxu0 0.0
    %699 = vmatprep.subr.mxu0 0.0
    %700 = vmatpush2.msra.mxu0 0.0
    %701 = vmatprep.subr.mxu0 0.0
    %702 = vmatpush2.msra.mxu0 0.0
    %703 = vmatprep.subr.mxu0 0.0
    %704 = vmatpush2.msra.mxu0 0.0
    %705 = vmatprep.subr.mxu0 0.0
    %706 = vmatpush2.msra.mxu0 0.0
    %707 = vmatprep.subr.mxu0 0.0
    %708 = vmatpush2.msra.mxu0 0.0
    %709 = vmatprep.subr.mxu0 0.0
    %710 = vmatpush2.msra.mxu0 0.0
    %711 = vmatprep.subr.mxu0 0.0
    %712 = vmatpush2.msra.mxu0 0.0
    %713 = vmatprep.subr.mxu0 0.0
    %714 = vmatpush2.msra.mxu0 0.0
    %715 = vmatprep.subr.mxu0 0.0
    %716 = vmatpush2.msra.mxu0 0.0
    %717 = vmatprep.mubr.f32.mxu0 0.0
    %v718 = vand.u32 %v169, 4294901760
    %719 = vmatmul.mubr.f32.gmra.mxu0 %v718
    %v720 = vpop.f32.mrf.mxu0
    %v721 = vadd.f32 %v602, %v720
    %v722 = vpop.f32.mrf.mxu0
    %723 = vdwg.mxu0
    %724 = vmatprep.subr.mxu0 0.0
    %v725 = vand.u32 %v168, 4294901760
    %726 = vmatpush1.msra.mxu0 %v725
    %727 = vmatprep.subr.mxu0 0.0
    %v728 = vand.u32 %v167, 4294901760
    %729 = vmatpush1.msra.mxu0 %v728
    %730 = vmatprep.subr.mxu0 0.0
    %v731 = vand.u32 %v166, 4294901760
    %732 = vmatpush1.msra.mxu0 %v731
    %733 = vmatprep.subr.mxu0 0.0
    %v734 = vand.u32 %v165, 4294901760
    %735 = vmatpush1.msra.mxu0 %v734
    %736 = vmatprep.subr.mxu0 0.0
    %v737 = vand.u32 %v164, 4294901760
    %738 = vmatpush1.msra.mxu0 %v737
    %739 = vmatprep.subr.mxu0 0.0
    %v740 = vand.u32 %v163, 4294901760
    %741 = vmatpush1.msra.mxu0 %v740
    %742 = vmatprep.subr.mxu0 0.0
    %v743 = vand.u32 %v162, 4294901760
    %744 = vmatpush1.msra.mxu0 %v743
    %745 = vmatprep.subr.mxu0 0.0
    %v746 = vand.u32 %v161, 4294901760
    %747 = vmatpush1.msra.mxu0 %v746
    %748 = vmatprep.subr.mxu0 0.0
    %v749 = vand.u32 %v160, 4294901760
    %750 = vmatpush1.msra.mxu0 %v749
    %751 = vmatprep.subr.mxu0 0.0
    %v752 = vand.u32 %v159, 4294901760
    %753 = vmatpush1.msra.mxu0 %v752
    %754 = vmatprep.subr.mxu0 0.0
    %v755 = vand.u32 %v158, 4294901760
    %756 = vmatpush1.msra.mxu0 %v755
    %757 = vmatprep.subr.mxu0 0.0
    %v758 = vand.u32 %v157, 4294901760
    %759 = vmatpush1.msra.mxu0 %v758
    %760 = vmatprep.subr.mxu0 0.0
    %v761 = vand.u32 %v156, 4294901760
    %762 = vmatpush1.msra.mxu0 %v761
    %763 = vmatprep.subr.mxu0 0.0
    %v764 = vand.u32 %v155, 4294901760
    %765 = vmatpush1.msra.mxu0 %v764
    %766 = vmatprep.subr.mxu0 0.0
    %v767 = vand.u32 %v154, 4294901760
    %768 = vmatpush1.msra.mxu0 %v767
    %769 = vmatprep.subr.mxu0 0.0
    %v770 = vand.u32 %v153, 4294901760
    %771 = vmatpush1.msra.mxu0 %v770
    %772 = vmatprep.subr.mxu0 0.0
    %773 = vmatpush2.msra.mxu0 0.0
    %774 = vmatprep.subr.mxu0 0.0
    %775 = vmatpush2.msra.mxu0 0.0
    %776 = vmatprep.subr.mxu0 0.0
    %777 = vmatpush2.msra.mxu0 0.0
    %778 = vmatprep.subr.mxu0 0.0
    %779 = vmatpush2.msra.mxu0 0.0
    %780 = vmatprep.subr.mxu0 0.0
    %781 = vmatpush2.msra.mxu0 0.0
    %782 = vmatprep.subr.mxu0 0.0
    %783 = vmatpush2.msra.mxu0 0.0
    %784 = vmatprep.subr.mxu0 0.0
    %785 = vmatpush2.msra.mxu0 0.0
    %786 = vmatprep.subr.mxu0 0.0
    %787 = vmatpush2.msra.mxu0 0.0
    %788 = vmatprep.subr.mxu0 0.0
    %789 = vmatpush2.msra.mxu0 0.0
    %790 = vmatprep.subr.mxu0 0.0
    %791 = vmatpush2.msra.mxu0 0.0
    %792 = vmatprep.subr.mxu0 0.0
    %793 = vmatpush2.msra.mxu0 0.0
    %794 = vmatprep.subr.mxu0 0.0
    %795 = vmatpush2.msra.mxu0 0.0
    %796 = vmatprep.subr.mxu0 0.0
    %797 = vmatpush2.msra.mxu0 0.0
    %798 = vmatprep.subr.mxu0 0.0
    %799 = vmatpush2.msra.mxu0 0.0
    %800 = vmatprep.subr.mxu0 0.0
    %801 = vmatpush2.msra.mxu0 0.0
    %802 = vmatprep.subr.mxu0 0.0
    %803 = vmatpush2.msra.mxu0 0.0
    %804 = vmatprep.mubr.f32.mxu0 0.0
    %v805 = vand.u32 %v169, 4294901760
    %806 = vmatmul.mubr.f32.gmra.mxu0 %v805
    %v807 = vpop.f32.mrf.mxu0
    %v808 = vadd.f32 %v721, %v807
    %v809 = vpop.f32.mrf.mxu0
    %810 = vdwg.mxu0
    %v811 = vmul.f32 %v150, %v150
    %812 = vmatprep.subr.mxu0 0.0
    %v813 = vand.u32 %v168, 4294901760
    %814 = vmatpush1.msra.mxu0 %v813
    %815 = vmatprep.subr.mxu0 0.0
    %v816 = vand.u32 %v167, 4294901760
    %817 = vmatpush1.msra.mxu0 %v816
    %818 = vmatprep.subr.mxu0 0.0
    %v819 = vand.u32 %v166, 4294901760
    %820 = vmatpush1.msra.mxu0 %v819
    %821 = vmatprep.subr.mxu0 0.0
    %v822 = vand.u32 %v165, 4294901760
    %823 = vmatpush1.msra.mxu0 %v822
    %824 = vmatprep.subr.mxu0 0.0
    %v825 = vand.u32 %v164, 4294901760
    %826 = vmatpush1.msra.mxu0 %v825
    %827 = vmatprep.subr.mxu0 0.0
    %v828 = vand.u32 %v163, 4294901760
    %829 = vmatpush1.msra.mxu0 %v828
    %830 = vmatprep.subr.mxu0 0.0
    %v831 = vand.u32 %v162, 4294901760
    %832 = vmatpush1.msra.mxu0 %v831
    %833 = vmatprep.subr.mxu0 0.0
    %v834 = vand.u32 %v161, 4294901760
    %835 = vmatpush1.msra.mxu0 %v834
    %836 = vmatprep.subr.mxu0 0.0
    %v837 = vand.u32 %v160, 4294901760
    %838 = vmatpush1.msra.mxu0 %v837
    %839 = vmatprep.subr.mxu0 0.0
    %v840 = vand.u32 %v159, 4294901760
    %841 = vmatpush1.msra.mxu0 %v840
    %842 = vmatprep.subr.mxu0 0.0
    %v843 = vand.u32 %v158, 4294901760
    %844 = vmatpush1.msra.mxu0 %v843
    %845 = vmatprep.subr.mxu0 0.0
    %v846 = vand.u32 %v157, 4294901760
    %847 = vmatpush1.msra.mxu0 %v846
    %848 = vmatprep.subr.mxu0 0.0
    %v849 = vand.u32 %v156, 4294901760
    %850 = vmatpush1.msra.mxu0 %v849
    %851 = vmatprep.subr.mxu0 0.0
    %v852 = vand.u32 %v155, 4294901760
    %853 = vmatpush1.msra.mxu0 %v852
    %854 = vmatprep.subr.mxu0 0.0
    %v855 = vand.u32 %v154, 4294901760
    %856 = vmatpush1.msra.mxu0 %v855
    %857 = vmatprep.subr.mxu0 0.0
    %v858 = vand.u32 %v153, 4294901760
    %859 = vmatpush1.msra.mxu0 %v858
    %860 = vmatprep.subr.mxu0 0.0
    %861 = vmatpush2.msra.mxu0 0.0
    %862 = vmatprep.subr.mxu0 0.0
    %863 = vmatpush2.msra.mxu0 0.0
    %864 = vmatprep.subr.mxu0 0.0
    %865 = vmatpush2.msra.mxu0 0.0
    %866 = vmatprep.subr.mxu0 0.0
    %867 = vmatpush2.msra.mxu0 0.0
    %868 = vmatprep.subr.mxu0 0.0
    %869 = vmatpush2.msra.mxu0 0.0
    %870 = vmatprep.subr.mxu0 0.0
    %871 = vmatpush2.msra.mxu0 0.0
    %872 = vmatprep.subr.mxu0 0.0
    %873 = vmatpush2.msra.mxu0 0.0
    %874 = vmatprep.subr.mxu0 0.0
    %875 = vmatpush2.msra.mxu0 0.0
    %876 = vmatprep.subr.mxu0 0.0
    %877 = vmatpush2.msra.mxu0 0.0
    %878 = vmatprep.subr.mxu0 0.0
    %879 = vmatpush2.msra.mxu0 0.0
    %880 = vmatprep.subr.mxu0 0.0
    %881 = vmatpush2.msra.mxu0 0.0
    %882 = vmatprep.subr.mxu0 0.0
    %883 = vmatpush2.msra.mxu0 0.0
    %884 = vmatprep.subr.mxu0 0.0
    %885 = vmatpush2.msra.mxu0 0.0
    %886 = vmatprep.subr.mxu0 0.0
    %887 = vmatpush2.msra.mxu0 0.0
    %888 = vmatprep.subr.mxu0 0.0
    %889 = vmatpush2.msra.mxu0 0.0
    %890 = vmatprep.subr.mxu0 0.0
    %891 = vmatpush2.msra.mxu0 0.0
    %892 = vmatprep.mubr.f32.mxu0 0.0
    %v893 = vand.u32 %v811, 4294901760
    %v894 = vsub.f32 %v811, %v893
    %v895 = vand.u32 %v894, 4294901760
    %v896 = vsub.f32 %v894, %v895
    %v897 = vand.u32 %v896, 4294901760
    %898 = vmatmul.mubr.f32.gmra.mxu0 %v897
    %v899 = vpop.f32.mrf.mxu0
    %v900 = vadd.f32 0.0, %v899
    %v901 = vpop.f32.mrf.mxu0
    %902 = vdwg.mxu0
    %903 = vmatprep.subr.mxu0 0.0
    %v904 = vand.u32 %v168, 4294901760
    %v905 = vsub.f32 %v168, %v904
    %v906 = vand.u32 %v905, 4294901760
    %v907 = vsub.f32 %v905, %v906
    %v908 = vand.u32 %v907, 4294901760
    %909 = vmatpush1.msra.mxu0 %v908
    %910 = vmatprep.subr.mxu0 0.0
    %v911 = vand.u32 %v167, 4294901760
    %v912 = vsub.f32 %v167, %v911
    %v913 = vand.u32 %v912, 4294901760
    %v914 = vsub.f32 %v912, %v913
    %v915 = vand.u32 %v914, 4294901760
    %916 = vmatpush1.msra.mxu0 %v915
    %917 = vmatprep.subr.mxu0 0.0
    %v918 = vand.u32 %v166, 4294901760
    %v919 = vsub.f32 %v166, %v918
    %v920 = vand.u32 %v919, 4294901760
    %v921 = vsub.f32 %v919, %v920
    %v922 = vand.u32 %v921, 4294901760
    %923 = vmatpush1.msra.mxu0 %v922
    %924 = vmatprep.subr.mxu0 0.0
    %v925 = vand.u32 %v165, 4294901760
    %v926 = vsub.f32 %v165, %v925
    %v927 = vand.u32 %v926, 4294901760
    %v928 = vsub.f32 %v926, %v927
    %v929 = vand.u32 %v928, 4294901760
    %930 = vmatpush1.msra.mxu0 %v929
    %931 = vmatprep.subr.mxu0 0.0
    %v932 = vand.u32 %v164, 4294901760
    %v933 = vsub.f32 %v164, %v932
    %v934 = vand.u32 %v933, 4294901760
    %v935 = vsub.f32 %v933, %v934
    %v936 = vand.u32 %v935, 4294901760
    %937 = vmatpush1.msra.mxu0 %v936
    %938 = vmatprep.subr.mxu0 0.0
    %v939 = vand.u32 %v163, 4294901760
    %v940 = vsub.f32 %v163, %v939
    %v941 = vand.u32 %v940, 4294901760
    %v942 = vsub.f32 %v940, %v941
    %v943 = vand.u32 %v942, 4294901760
    %944 = vmatpush1.msra.mxu0 %v943
    %945 = vmatprep.subr.mxu0 0.0
    %v946 = vand.u32 %v162, 4294901760
    %v947 = vsub.f32 %v162, %v946
    %v948 = vand.u32 %v947, 4294901760
    %v949 = vsub.f32 %v947, %v948
    %v950 = vand.u32 %v949, 4294901760
    %951 = vmatpush1.msra.mxu0 %v950
    %952 = vmatprep.subr.mxu0 0.0
    %v953 = vand.u32 %v161, 4294901760
    %v954 = vsub.f32 %v161, %v953
    %v955 = vand.u32 %v954, 4294901760
    %v956 = vsub.f32 %v954, %v955
    %v957 = vand.u32 %v956, 4294901760
    %958 = vmatpush1.msra.mxu0 %v957
    %959 = vmatprep.subr.mxu0 0.0
    %v960 = vand.u32 %v160, 4294901760
    %v961 = vsub.f32 %v160, %v960
    %v962 = vand.u32 %v961, 4294901760
    %v963 = vsub.f32 %v961, %v962
    %v964 = vand.u32 %v963, 4294901760
    %965 = vmatpush1.msra.mxu0 %v964
    %966 = vmatprep.subr.mxu0 0.0
    %v967 = vand.u32 %v159, 4294901760
    %v968 = vsub.f32 %v159, %v967
    %v969 = vand.u32 %v968, 4294901760
    %v970 = vsub.f32 %v968, %v969
    %v971 = vand.u32 %v970, 4294901760
    %972 = vmatpush1.msra.mxu0 %v971
    %973 = vmatprep.subr.mxu0 0.0
    %v974 = vand.u32 %v158, 4294901760
    %v975 = vsub.f32 %v158, %v974
    %v976 = vand.u32 %v975, 4294901760
    %v977 = vsub.f32 %v975, %v976
    %v978 = vand.u32 %v977, 4294901760
    %979 = vmatpush1.msra.mxu0 %v978
    %980 = vmatprep.subr.mxu0 0.0
    %v981 = vand.u32 %v157, 4294901760
    %v982 = vsub.f32 %v157, %v981
    %v983 = vand.u32 %v982, 4294901760
    %v984 = vsub.f32 %v982, %v983
    %v985 = vand.u32 %v984, 4294901760
    %986 = vmatpush1.msra.mxu0 %v985
    %987 = vmatprep.subr.mxu0 0.0
    %v988 = vand.u32 %v156, 4294901760
    %v989 = vsub.f32 %v156, %v988
    %v990 = vand.u32 %v989, 4294901760
    %v991 = vsub.f32 %v989, %v990
    %v992 = vand.u32 %v991, 4294901760
    %993 = vmatpush1.msra.mxu0 %v992
    %994 = vmatprep.subr.mxu0 0.0
    %v995 = vand.u32 %v155, 4294901760
    %v996 = vsub.f32 %v155, %v995
    %v997 = vand.u32 %v996, 4294901760
    %v998 = vsub.f32 %v996, %v997
    %v999 = vand.u32 %v998, 4294901760
    %1000 = vmatpush1.msra.mxu0 %v999
    %1001 = vmatprep.subr.mxu0 0.0
    %v1002 = vand.u32 %v154, 4294901760
    %v1003 = vsub.f32 %v154, %v1002
    %v1004 = vand.u32 %v1003, 4294901760
    %v1005 = vsub.f32 %v1003, %v1004
    %v1006 = vand.u32 %v1005, 4294901760
    %1007 = vmatpush1.msra.mxu0 %v1006
    %1008 = vmatprep.subr.mxu0 0.0
    %v1009 = vand.u32 %v153, 4294901760
    %v1010 = vsub.f32 %v153, %v1009
    %v1011 = vand.u32 %v1010, 4294901760
    %v1012 = vsub.f32 %v1010, %v1011
    %v1013 = vand.u32 %v1012, 4294901760
    %1014 = vmatpush1.msra.mxu0 %v1013
    %1015 = vmatprep.subr.mxu0 0.0
    %1016 = vmatpush2.msra.mxu0 0.0
    %1017 = vmatprep.subr.mxu0 0.0
    %1018 = vmatpush2.msra.mxu0 0.0
    %1019 = vmatprep.subr.mxu0 0.0
    %1020 = vmatpush2.msra.mxu0 0.0
    %1021 = vmatprep.subr.mxu0 0.0
    %1022 = vmatpush2.msra.mxu0 0.0
    %1023 = vmatprep.subr.mxu0 0.0
    %1024 = vmatpush2.msra.mxu0 0.0
    %1025 = vmatprep.subr.mxu0 0.0
    %1026 = vmatpush2.msra.mxu0 0.0
    %1027 = vmatprep.subr.mxu0 0.0
    %1028 = vmatpush2.msra.mxu0 0.0
    %1029 = vmatprep.subr.mxu0 0.0
    %1030 = vmatpush2.msra.mxu0 0.0
    %1031 = vmatprep.subr.mxu0 0.0
    %1032 = vmatpush2.msra.mxu0 0.0
    %1033 = vmatprep.subr.mxu0 0.0
    %1034 = vmatpush2.msra.mxu0 0.0
    %1035 = vmatprep.subr.mxu0 0.0
    %1036 = vmatpush2.msra.mxu0 0.0
    %1037 = vmatprep.subr.mxu0 0.0
    %1038 = vmatpush2.msra.mxu0 0.0
    %1039 = vmatprep.subr.mxu0 0.0
    %1040 = vmatpush2.msra.mxu0 0.0
    %1041 = vmatprep.subr.mxu0 0.0
    %1042 = vmatpush2.msra.mxu0 0.0
    %1043 = vmatprep.subr.mxu0 0.0
    %1044 = vmatpush2.msra.mxu0 0.0
    %1045 = vmatprep.subr.mxu0 0.0
    %1046 = vmatpush2.msra.mxu0 0.0
    %1047 = vmatprep.mubr.f32.mxu0 0.0
    %v1048 = vand.u32 %v811, 4294901760
    %1049 = vmatmul.mubr.f32.gmra.mxu0 %v1048
    %v1050 = vpop.f32.mrf.mxu0
    %v1051 = vadd.f32 %v900, %v1050
    %v1052 = vpop.f32.mrf.mxu0
    %1053 = vdwg.mxu0
    %1054 = vmatprep.subr.mxu0 0.0
    %v1055 = vand.u32 %v168, 4294901760
    %v1056 = vsub.f32 %v168, %v1055
    %1057 = vmatpush1.msra.mxu0 %v1056
    %1058 = vmatprep.subr.mxu0 0.0
    %v1059 = vand.u32 %v167, 4294901760
    %v1060 = vsub.f32 %v167, %v1059
    %1061 = vmatpush1.msra.mxu0 %v1060
    %1062 = vmatprep.subr.mxu0 0.0
    %v1063 = vand.u32 %v166, 4294901760
    %v1064 = vsub.f32 %v166, %v1063
    %1065 = vmatpush1.msra.mxu0 %v1064
    %1066 = vmatprep.subr.mxu0 0.0
    %v1067 = vand.u32 %v165, 4294901760
    %v1068 = vsub.f32 %v165, %v1067
    %1069 = vmatpush1.msra.mxu0 %v1068
    %1070 = vmatprep.subr.mxu0 0.0
    %v1071 = vand.u32 %v164, 4294901760
    %v1072 = vsub.f32 %v164, %v1071
    %1073 = vmatpush1.msra.mxu0 %v1072
    %1074 = vmatprep.subr.mxu0 0.0
    %v1075 = vand.u32 %v163, 4294901760
    %v1076 = vsub.f32 %v163, %v1075
    %1077 = vmatpush1.msra.mxu0 %v1076
    %1078 = vmatprep.subr.mxu0 0.0
    %v1079 = vand.u32 %v162, 4294901760
    %v1080 = vsub.f32 %v162, %v1079
    %1081 = vmatpush1.msra.mxu0 %v1080
    %1082 = vmatprep.subr.mxu0 0.0
    %v1083 = vand.u32 %v161, 4294901760
    %v1084 = vsub.f32 %v161, %v1083
    %1085 = vmatpush1.msra.mxu0 %v1084
    %1086 = vmatprep.subr.mxu0 0.0
    %v1087 = vand.u32 %v160, 4294901760
    %v1088 = vsub.f32 %v160, %v1087
    %1089 = vmatpush1.msra.mxu0 %v1088
    %1090 = vmatprep.subr.mxu0 0.0
    %v1091 = vand.u32 %v159, 4294901760
    %v1092 = vsub.f32 %v159, %v1091
    %1093 = vmatpush1.msra.mxu0 %v1092
    %1094 = vmatprep.subr.mxu0 0.0
    %v1095 = vand.u32 %v158, 4294901760
    %v1096 = vsub.f32 %v158, %v1095
    %1097 = vmatpush1.msra.mxu0 %v1096
    %1098 = vmatprep.subr.mxu0 0.0
    %v1099 = vand.u32 %v157, 4294901760
    %v1100 = vsub.f32 %v157, %v1099
    %1101 = vmatpush1.msra.mxu0 %v1100
    %1102 = vmatprep.subr.mxu0 0.0
    %v1103 = vand.u32 %v156, 4294901760
    %v1104 = vsub.f32 %v156, %v1103
    %1105 = vmatpush1.msra.mxu0 %v1104
    %1106 = vmatprep.subr.mxu0 0.0
    %v1107 = vand.u32 %v155, 4294901760
    %v1108 = vsub.f32 %v155, %v1107
    %1109 = vmatpush1.msra.mxu0 %v1108
    %1110 = vmatprep.subr.mxu0 0.0
    %v1111 = vand.u32 %v154, 4294901760
    %v1112 = vsub.f32 %v154, %v1111
    %1113 = vmatpush1.msra.mxu0 %v1112
    %1114 = vmatprep.subr.mxu0 0.0
    %v1115 = vand.u32 %v153, 4294901760
    %v1116 = vsub.f32 %v153, %v1115
    %1117 = vmatpush1.msra.mxu0 %v1116
    %1118 = vmatprep.subr.mxu0 0.0
    %1119 = vmatpush2.msra.mxu0 0.0
    %1120 = vmatprep.subr.mxu0 0.0
    %1121 = vmatpush2.msra.mxu0 0.0
    %1122 = vmatprep.subr.mxu0 0.0
    %1123 = vmatpush2.msra.mxu0 0.0
    %1124 = vmatprep.subr.mxu0 0.0
    %1125 = vmatpush2.msra.mxu0 0.0
    %1126 = vmatprep.subr.mxu0 0.0
    %1127 = vmatpush2.msra.mxu0 0.0
    %1128 = vmatprep.subr.mxu0 0.0
    %1129 = vmatpush2.msra.mxu0 0.0
    %1130 = vmatprep.subr.mxu0 0.0
    %1131 = vmatpush2.msra.mxu0 0.0
    %1132 = vmatprep.subr.mxu0 0.0
    %1133 = vmatpush2.msra.mxu0 0.0
    %1134 = vmatprep.subr.mxu0 0.0
    %1135 = vmatpush2.msra.mxu0 0.0
    %1136 = vmatprep.subr.mxu0 0.0
    %1137 = vmatpush2.msra.mxu0 0.0
    %1138 = vmatprep.subr.mxu0 0.0
    %1139 = vmatpush2.msra.mxu0 0.0
    %1140 = vmatprep.subr.mxu0 0.0
    %1141 = vmatpush2.msra.mxu0 0.0
    %1142 = vmatprep.subr.mxu0 0.0
    %1143 = vmatpush2.msra.mxu0 0.0
    %1144 = vmatprep.subr.mxu0 0.0
    %1145 = vmatpush2.msra.mxu0 0.0
    %1146 = vmatprep.subr.mxu0 0.0
    %1147 = vmatpush2.msra.mxu0 0.0
    %1148 = vmatprep.subr.mxu0 0.0
    %1149 = vmatpush2.msra.mxu0 0.0
    %1150 = vmatprep.mubr.f32.mxu0 0.0
    %v1151 = vand.u32 %v811, 4294901760
    %v1152 = vsub.f32 %v811, %v1151
    %1153 = vmatmul.mubr.f32.gmra.mxu0 %v1152
    %v1154 = vpop.f32.mrf.mxu0
    %v1155 = vadd.f32 %v1051, %v1154
    %v1156 = vpop.f32.mrf.mxu0
    %1157 = vdwg.mxu0
    %1158 = vmatprep.subr.mxu0 0.0
    %v1159 = vand.u32 %v168, 4294901760
    %1160 = vmatpush1.msra.mxu0 %v1159
    %1161 = vmatprep.subr.mxu0 0.0
    %v1162 = vand.u32 %v167, 4294901760
    %1163 = vmatpush1.msra.mxu0 %v1162
    %1164 = vmatprep.subr.mxu0 0.0
    %v1165 = vand.u32 %v166, 4294901760
    %1166 = vmatpush1.msra.mxu0 %v1165
    %1167 = vmatprep.subr.mxu0 0.0
    %v1168 = vand.u32 %v165, 4294901760
    %1169 = vmatpush1.msra.mxu0 %v1168
    %1170 = vmatprep.subr.mxu0 0.0
    %v1171 = vand.u32 %v164, 4294901760
    %1172 = vmatpush1.msra.mxu0 %v1171
    %1173 = vmatprep.subr.mxu0 0.0
    %v1174 = vand.u32 %v163, 4294901760
    %1175 = vmatpush1.msra.mxu0 %v1174
    %1176 = vmatprep.subr.mxu0 0.0
    %v1177 = vand.u32 %v162, 4294901760
    %1178 = vmatpush1.msra.mxu0 %v1177
    %1179 = vmatprep.subr.mxu0 0.0
    %v1180 = vand.u32 %v161, 4294901760
    %1181 = vmatpush1.msra.mxu0 %v1180
    %1182 = vmatprep.subr.mxu0 0.0
    %v1183 = vand.u32 %v160, 4294901760
    %1184 = vmatpush1.msra.mxu0 %v1183
    %1185 = vmatprep.subr.mxu0 0.0
    %v1186 = vand.u32 %v159, 4294901760
    %1187 = vmatpush1.msra.mxu0 %v1186
    %1188 = vmatprep.subr.mxu0 0.0
    %v1189 = vand.u32 %v158, 4294901760
    %1190 = vmatpush1.msra.mxu0 %v1189
    %1191 = vmatprep.subr.mxu0 0.0
    %v1192 = vand.u32 %v157, 4294901760
    %1193 = vmatpush1.msra.mxu0 %v1192
    %1194 = vmatprep.subr.mxu0 0.0
    %v1195 = vand.u32 %v156, 4294901760
    %1196 = vmatpush1.msra.mxu0 %v1195
    %1197 = vmatprep.subr.mxu0 0.0
    %v1198 = vand.u32 %v155, 4294901760
    %1199 = vmatpush1.msra.mxu0 %v1198
    %1200 = vmatprep.subr.mxu0 0.0
    %v1201 = vand.u32 %v154, 4294901760
    %1202 = vmatpush1.msra.mxu0 %v1201
    %1203 = vmatprep.subr.mxu0 0.0
    %v1204 = vand.u32 %v153, 4294901760
    %1205 = vmatpush1.msra.mxu0 %v1204
    %1206 = vmatprep.subr.mxu0 0.0
    %1207 = vmatpush2.msra.mxu0 0.0
    %1208 = vmatprep.subr.mxu0 0.0
    %1209 = vmatpush2.msra.mxu0 0.0
    %1210 = vmatprep.subr.mxu0 0.0
    %1211 = vmatpush2.msra.mxu0 0.0
    %1212 = vmatprep.subr.mxu0 0.0
    %1213 = vmatpush2.msra.mxu0 0.0
    %1214 = vmatprep.subr.mxu0 0.0
    %1215 = vmatpush2.msra.mxu0 0.0
    %1216 = vmatprep.subr.mxu0 0.0
    %1217 = vmatpush2.msra.mxu0 0.0
    %1218 = vmatprep.subr.mxu0 0.0
    %1219 = vmatpush2.msra.mxu0 0.0
    %1220 = vmatprep.subr.mxu0 0.0
    %1221 = vmatpush2.msra.mxu0 0.0
    %1222 = vmatprep.subr.mxu0 0.0
    %1223 = vmatpush2.msra.mxu0 0.0
    %1224 = vmatprep.subr.mxu0 0.0
    %1225 = vmatpush2.msra.mxu0 0.0
    %1226 = vmatprep.subr.mxu0 0.0
    %1227 = vmatpush2.msra.mxu0 0.0
    %1228 = vmatprep.subr.mxu0 0.0
    %1229 = vmatpush2.msra.mxu0 0.0
    %1230 = vmatprep.subr.mxu0 0.0
    %1231 = vmatpush2.msra.mxu0 0.0
    %1232 = vmatprep.subr.mxu0 0.0
    %1233 = vmatpush2.msra.mxu0 0.0
    %1234 = vmatprep.subr.mxu0 0.0
    %1235 = vmatpush2.msra.mxu0 0.0
    %1236 = vmatprep.subr.mxu0 0.0
    %1237 = vmatpush2.msra.mxu0 0.0
    %1238 = vmatprep.mubr.f32.mxu0 0.0
    %v1239 = vand.u32 %v811, 4294901760
    %v1240 = vsub.f32 %v811, %v1239
    %v1241 = vand.u32 %v1240, 4294901760
    %1242 = vmatmul.mubr.f32.gmra.mxu0 %v1241
    %v1243 = vpop.f32.mrf.mxu0
    %v1244 = vadd.f32 %v1155, %v1243
    %v1245 = vpop.f32.mrf.mxu0
    %1246 = vdwg.mxu0
    %1247 = vmatprep.subr.mxu0 0.0
    %v1248 = vand.u32 %v168, 4294901760
    %v1249 = vsub.f32 %v168, %v1248
    %v1250 = vand.u32 %v1249, 4294901760
    %1251 = vmatpush1.msra.mxu0 %v1250
    %1252 = vmatprep.subr.mxu0 0.0
    %v1253 = vand.u32 %v167, 4294901760
    %v1254 = vsub.f32 %v167, %v1253
    %v1255 = vand.u32 %v1254, 4294901760
    %1256 = vmatpush1.msra.mxu0 %v1255
    %1257 = vmatprep.subr.mxu0 0.0
    %v1258 = vand.u32 %v166, 4294901760
    %v1259 = vsub.f32 %v166, %v1258
    %v1260 = vand.u32 %v1259, 4294901760
    %1261 = vmatpush1.msra.mxu0 %v1260
    %1262 = vmatprep.subr.mxu0 0.0
    %v1263 = vand.u32 %v165, 4294901760
    %v1264 = vsub.f32 %v165, %v1263
    %v1265 = vand.u32 %v1264, 4294901760
    %1266 = vmatpush1.msra.mxu0 %v1265
    %1267 = vmatprep.subr.mxu0 0.0
    %v1268 = vand.u32 %v164, 4294901760
    %v1269 = vsub.f32 %v164, %v1268
    %v1270 = vand.u32 %v1269, 4294901760
    %1271 = vmatpush1.msra.mxu0 %v1270
    %1272 = vmatprep.subr.mxu0 0.0
    %v1273 = vand.u32 %v163, 4294901760
    %v1274 = vsub.f32 %v163, %v1273
    %v1275 = vand.u32 %v1274, 4294901760
    %1276 = vmatpush1.msra.mxu0 %v1275
    %1277 = vmatprep.subr.mxu0 0.0
    %v1278 = vand.u32 %v162, 4294901760
    %v1279 = vsub.f32 %v162, %v1278
    %v1280 = vand.u32 %v1279, 4294901760
    %1281 = vmatpush1.msra.mxu0 %v1280
    %1282 = vmatprep.subr.mxu0 0.0
    %v1283 = vand.u32 %v161, 4294901760
    %v1284 = vsub.f32 %v161, %v1283
    %v1285 = vand.u32 %v1284, 4294901760
    %1286 = vmatpush1.msra.mxu0 %v1285
    %1287 = vmatprep.subr.mxu0 0.0
    %v1288 = vand.u32 %v160, 4294901760
    %v1289 = vsub.f32 %v160, %v1288
    %v1290 = vand.u32 %v1289, 4294901760
    %1291 = vmatpush1.msra.mxu0 %v1290
    %1292 = vmatprep.subr.mxu0 0.0
    %v1293 = vand.u32 %v159, 4294901760
    %v1294 = vsub.f32 %v159, %v1293
    %v1295 = vand.u32 %v1294, 4294901760
    %1296 = vmatpush1.msra.mxu0 %v1295
    %1297 = vmatprep.subr.mxu0 0.0
    %v1298 = vand.u32 %v158, 4294901760
    %v1299 = vsub.f32 %v158, %v1298
    %v1300 = vand.u32 %v1299, 4294901760
    %1301 = vmatpush1.msra.mxu0 %v1300
    %1302 = vmatprep.subr.mxu0 0.0
    %v1303 = vand.u32 %v157, 4294901760
    %v1304 = vsub.f32 %v157, %v1303
    %v1305 = vand.u32 %v1304, 4294901760
    %1306 = vmatpush1.msra.mxu0 %v1305
    %1307 = vmatprep.subr.mxu0 0.0
    %v1308 = vand.u32 %v156, 4294901760
    %v1309 = vsub.f32 %v156, %v1308
    %v1310 = vand.u32 %v1309, 4294901760
    %1311 = vmatpush1.msra.mxu0 %v1310
    %1312 = vmatprep.subr.mxu0 0.0
    %v1313 = vand.u32 %v155, 4294901760
    %v1314 = vsub.f32 %v155, %v1313
    %v1315 = vand.u32 %v1314, 4294901760
    %1316 = vmatpush1.msra.mxu0 %v1315
    %1317 = vmatprep.subr.mxu0 0.0
    %v1318 = vand.u32 %v154, 4294901760
    %v1319 = vsub.f32 %v154, %v1318
    %v1320 = vand.u32 %v1319, 4294901760
    %1321 = vmatpush1.msra.mxu0 %v1320
    %1322 = vmatprep.subr.mxu0 0.0
    %v1323 = vand.u32 %v153, 4294901760
    %v1324 = vsub.f32 %v153, %v1323
    %v1325 = vand.u32 %v1324, 4294901760
    %1326 = vmatpush1.msra.mxu0 %v1325
    %1327 = vmatprep.subr.mxu0 0.0
    %1328 = vmatpush2.msra.mxu0 0.0
    %1329 = vmatprep.subr.mxu0 0.0
    %1330 = vmatpush2.msra.mxu0 0.0
    %1331 = vmatprep.subr.mxu0 0.0
    %1332 = vmatpush2.msra.mxu0 0.0
    %1333 = vmatprep.subr.mxu0 0.0
    %1334 = vmatpush2.msra.mxu0 0.0
    %1335 = vmatprep.subr.mxu0 0.0
    %1336 = vmatpush2.msra.mxu0 0.0
    %1337 = vmatprep.subr.mxu0 0.0
    %1338 = vmatpush2.msra.mxu0 0.0
    %1339 = vmatprep.subr.mxu0 0.0
    %1340 = vmatpush2.msra.mxu0 0.0
    %1341 = vmatprep.subr.mxu0 0.0
    %1342 = vmatpush2.msra.mxu0 0.0
    %1343 = vmatprep.subr.mxu0 0.0
    %1344 = vmatpush2.msra.mxu0 0.0
    %1345 = vmatprep.subr.mxu0 0.0
    %1346 = vmatpush2.msra.mxu0 0.0
    %1347 = vmatprep.subr.mxu0 0.0
    %1348 = vmatpush2.msra.mxu0 0.0
    %1349 = vmatprep.subr.mxu0 0.0
    %1350 = vmatpush2.msra.mxu0 0.0
    %1351 = vmatprep.subr.mxu0 0.0
    %1352 = vmatpush2.msra.mxu0 0.0
    %1353 = vmatprep.subr.mxu0 0.0
    %1354 = vmatpush2.msra.mxu0 0.0
    %1355 = vmatprep.subr.mxu0 0.0
    %1356 = vmatpush2.msra.mxu0 0.0
    %1357 = vmatprep.subr.mxu0 0.0
    %1358 = vmatpush2.msra.mxu0 0.0
    %1359 = vmatprep.mubr.f32.mxu0 0.0
    %v1360 = vand.u32 %v811, 4294901760
    %1361 = vmatmul.mubr.f32.gmra.mxu0 %v1360
    %v1362 = vpop.f32.mrf.mxu0
    %v1363 = vadd.f32 %v1244, %v1362
    %v1364 = vpop.f32.mrf.mxu0
    %1365 = vdwg.mxu0
    %1366 = vmatprep.subr.mxu0 0.0
    %v1367 = vand.u32 %v168, 4294901760
    %1368 = vmatpush1.msra.mxu0 %v1367
    %1369 = vmatprep.subr.mxu0 0.0
    %v1370 = vand.u32 %v167, 4294901760
    %1371 = vmatpush1.msra.mxu0 %v1370
    %1372 = vmatprep.subr.mxu0 0.0
    %v1373 = vand.u32 %v166, 4294901760
    %1374 = vmatpush1.msra.mxu0 %v1373
    %1375 = vmatprep.subr.mxu0 0.0
    %v1376 = vand.u32 %v165, 4294901760
    %1377 = vmatpush1.msra.mxu0 %v1376
    %1378 = vmatprep.subr.mxu0 0.0
    %v1379 = vand.u32 %v164, 4294901760
    %1380 = vmatpush1.msra.mxu0 %v1379
    %1381 = vmatprep.subr.mxu0 0.0
    %v1382 = vand.u32 %v163, 4294901760
    %1383 = vmatpush1.msra.mxu0 %v1382
    %1384 = vmatprep.subr.mxu0 0.0
    %v1385 = vand.u32 %v162, 4294901760
    %1386 = vmatpush1.msra.mxu0 %v1385
    %1387 = vmatprep.subr.mxu0 0.0
    %v1388 = vand.u32 %v161, 4294901760
    %1389 = vmatpush1.msra.mxu0 %v1388
    %1390 = vmatprep.subr.mxu0 0.0
    %v1391 = vand.u32 %v160, 4294901760
    %1392 = vmatpush1.msra.mxu0 %v1391
    %1393 = vmatprep.subr.mxu0 0.0
    %v1394 = vand.u32 %v159, 4294901760
    %1395 = vmatpush1.msra.mxu0 %v1394
    %1396 = vmatprep.subr.mxu0 0.0
    %v1397 = vand.u32 %v158, 4294901760
    %1398 = vmatpush1.msra.mxu0 %v1397
    %1399 = vmatprep.subr.mxu0 0.0
    %v1400 = vand.u32 %v157, 4294901760
    %1401 = vmatpush1.msra.mxu0 %v1400
    %1402 = vmatprep.subr.mxu0 0.0
    %v1403 = vand.u32 %v156, 4294901760
    %1404 = vmatpush1.msra.mxu0 %v1403
    %1405 = vmatprep.subr.mxu0 0.0
    %v1406 = vand.u32 %v155, 4294901760
    %1407 = vmatpush1.msra.mxu0 %v1406
    %1408 = vmatprep.subr.mxu0 0.0
    %v1409 = vand.u32 %v154, 4294901760
    %1410 = vmatpush1.msra.mxu0 %v1409
    %1411 = vmatprep.subr.mxu0 0.0
    %v1412 = vand.u32 %v153, 4294901760
    %1413 = vmatpush1.msra.mxu0 %v1412
    %1414 = vmatprep.subr.mxu0 0.0
    %1415 = vmatpush2.msra.mxu0 0.0
    %1416 = vmatprep.subr.mxu0 0.0
    %1417 = vmatpush2.msra.mxu0 0.0
    %1418 = vmatprep.subr.mxu0 0.0
    %1419 = vmatpush2.msra.mxu0 0.0
    %1420 = vmatprep.subr.mxu0 0.0
    %1421 = vmatpush2.msra.mxu0 0.0
    %1422 = vmatprep.subr.mxu0 0.0
    %1423 = vmatpush2.msra.mxu0 0.0
    %1424 = vmatprep.subr.mxu0 0.0
    %1425 = vmatpush2.msra.mxu0 0.0
    %1426 = vmatprep.subr.mxu0 0.0
    %1427 = vmatpush2.msra.mxu0 0.0
    %1428 = vmatprep.subr.mxu0 0.0
    %1429 = vmatpush2.msra.mxu0 0.0
    %1430 = vmatprep.subr.mxu0 0.0
    %1431 = vmatpush2.msra.mxu0 0.0
    %1432 = vmatprep.subr.mxu0 0.0
    %1433 = vmatpush2.msra.mxu0 0.0
    %1434 = vmatprep.subr.mxu0 0.0
    %1435 = vmatpush2.msra.mxu0 0.0
    %1436 = vmatprep.subr.mxu0 0.0
    %1437 = vmatpush2.msra.mxu0 0.0
    %1438 = vmatprep.subr.mxu0 0.0
    %1439 = vmatpush2.msra.mxu0 0.0
    %1440 = vmatprep.subr.mxu0 0.0
    %1441 = vmatpush2.msra.mxu0 0.0
    %1442 = vmatprep.subr.mxu0 0.0
    %1443 = vmatpush2.msra.mxu0 0.0
    %1444 = vmatprep.subr.mxu0 0.0
    %1445 = vmatpush2.msra.mxu0 0.0
    %1446 = vmatprep.mubr.f32.mxu0 0.0
    %v1447 = vand.u32 %v811, 4294901760
    %1448 = vmatmul.mubr.f32.gmra.mxu0 %v1447
    %v1449 = vpop.f32.mrf.mxu0
    %v1450 = vadd.f32 %v1363, %v1449
    %v1451 = vpop.f32.mrf.mxu0
    %1452 = vdwg.mxu0
    %v1453 = vmul.f32 %v151, %v151
    %1454 = vmatprep.subr.mxu0 0.0
    %v1455 = vand.u32 %v168, 4294901760
    %1456 = vmatpush1.msra.mxu0 %v1455
    %1457 = vmatprep.subr.mxu0 0.0
    %v1458 = vand.u32 %v167, 4294901760
    %1459 = vmatpush1.msra.mxu0 %v1458
    %1460 = vmatprep.subr.mxu0 0.0
    %v1461 = vand.u32 %v166, 4294901760
    %1462 = vmatpush1.msra.mxu0 %v1461
    %1463 = vmatprep.subr.mxu0 0.0
    %v1464 = vand.u32 %v165, 4294901760
    %1465 = vmatpush1.msra.mxu0 %v1464
    %1466 = vmatprep.subr.mxu0 0.0
    %v1467 = vand.u32 %v164, 4294901760
    %1468 = vmatpush1.msra.mxu0 %v1467
    %1469 = vmatprep.subr.mxu0 0.0
    %v1470 = vand.u32 %v163, 4294901760
    %1471 = vmatpush1.msra.mxu0 %v1470
    %1472 = vmatprep.subr.mxu0 0.0
    %v1473 = vand.u32 %v162, 4294901760
    %1474 = vmatpush1.msra.mxu0 %v1473
    %1475 = vmatprep.subr.mxu0 0.0
    %v1476 = vand.u32 %v161, 4294901760
    %1477 = vmatpush1.msra.mxu0 %v1476
    %1478 = vmatprep.subr.mxu0 0.0
    %v1479 = vand.u32 %v160, 4294901760
    %1480 = vmatpush1.msra.mxu0 %v1479
    %1481 = vmatprep.subr.mxu0 0.0
    %v1482 = vand.u32 %v159, 4294901760
    %1483 = vmatpush1.msra.mxu0 %v1482
    %1484 = vmatprep.subr.mxu0 0.0
    %v1485 = vand.u32 %v158, 4294901760
    %1486 = vmatpush1.msra.mxu0 %v1485
    %1487 = vmatprep.subr.mxu0 0.0
    %v1488 = vand.u32 %v157, 4294901760
    %1489 = vmatpush1.msra.mxu0 %v1488
    %1490 = vmatprep.subr.mxu0 0.0
    %v1491 = vand.u32 %v156, 4294901760
    %1492 = vmatpush1.msra.mxu0 %v1491
    %1493 = vmatprep.subr.mxu0 0.0
    %v1494 = vand.u32 %v155, 4294901760
    %1495 = vmatpush1.msra.mxu0 %v1494
    %1496 = vmatprep.subr.mxu0 0.0
    %v1497 = vand.u32 %v154, 4294901760
    %1498 = vmatpush1.msra.mxu0 %v1497
    %1499 = vmatprep.subr.mxu0 0.0
    %v1500 = vand.u32 %v153, 4294901760
    %1501 = vmatpush1.msra.mxu0 %v1500
    %1502 = vmatprep.subr.mxu0 0.0
    %1503 = vmatpush2.msra.mxu0 0.0
    %1504 = vmatprep.subr.mxu0 0.0
    %1505 = vmatpush2.msra.mxu0 0.0
    %1506 = vmatprep.subr.mxu0 0.0
    %1507 = vmatpush2.msra.mxu0 0.0
    %1508 = vmatprep.subr.mxu0 0.0
    %1509 = vmatpush2.msra.mxu0 0.0
    %1510 = vmatprep.subr.mxu0 0.0
    %1511 = vmatpush2.msra.mxu0 0.0
    %1512 = vmatprep.subr.mxu0 0.0
    %1513 = vmatpush2.msra.mxu0 0.0
    %1514 = vmatprep.subr.mxu0 0.0
    %1515 = vmatpush2.msra.mxu0 0.0
    %1516 = vmatprep.subr.mxu0 0.0
    %1517 = vmatpush2.msra.mxu0 0.0
    %1518 = vmatprep.subr.mxu0 0.0
    %1519 = vmatpush2.msra.mxu0 0.0
    %1520 = vmatprep.subr.mxu0 0.0
    %1521 = vmatpush2.msra.mxu0 0.0
    %1522 = vmatprep.subr.mxu0 0.0
    %1523 = vmatpush2.msra.mxu0 0.0
    %1524 = vmatprep.subr.mxu0 0.0
    %1525 = vmatpush2.msra.mxu0 0.0
    %1526 = vmatprep.subr.mxu0 0.0
    %1527 = vmatpush2.msra.mxu0 0.0
    %1528 = vmatprep.subr.mxu0 0.0
    %1529 = vmatpush2.msra.mxu0 0.0
    %1530 = vmatprep.subr.mxu0 0.0
    %1531 = vmatpush2.msra.mxu0 0.0
    %1532 = vmatprep.subr.mxu0 0.0
    %1533 = vmatpush2.msra.mxu0 0.0
    %1534 = vmatprep.mubr.f32.mxu0 0.0
    %v1535 = vand.u32 %v1453, 4294901760
    %v1536 = vsub.f32 %v1453, %v1535
    %v1537 = vand.u32 %v1536, 4294901760
    %v1538 = vsub.f32 %v1536, %v1537
    %v1539 = vand.u32 %v1538, 4294901760
    %1540 = vmatmul.mubr.f32.gmra.mxu0 %v1539
    %v1541 = vpop.f32.mrf.mxu0
    %v1542 = vadd.f32 0.0, %v1541
    %v1543 = vpop.f32.mrf.mxu0
    %1544 = vdwg.mxu0
    %1545 = vmatprep.subr.mxu0 0.0
    %v1546 = vand.u32 %v168, 4294901760
    %v1547 = vsub.f32 %v168, %v1546
    %v1548 = vand.u32 %v1547, 4294901760
    %v1549 = vsub.f32 %v1547, %v1548
    %v1550 = vand.u32 %v1549, 4294901760
    %1551 = vmatpush1.msra.mxu0 %v1550
    %1552 = vmatprep.subr.mxu0 0.0
    %v1553 = vand.u32 %v167, 4294901760
    %v1554 = vsub.f32 %v167, %v1553
    %v1555 = vand.u32 %v1554, 4294901760
    %v1556 = vsub.f32 %v1554, %v1555
    %v1557 = vand.u32 %v1556, 4294901760
    %1558 = vmatpush1.msra.mxu0 %v1557
    %1559 = vmatprep.subr.mxu0 0.0
    %v1560 = vand.u32 %v166, 4294901760
    %v1561 = vsub.f32 %v166, %v1560
    %v1562 = vand.u32 %v1561, 4294901760
    %v1563 = vsub.f32 %v1561, %v1562
    %v1564 = vand.u32 %v1563, 4294901760
    %1565 = vmatpush1.msra.mxu0 %v1564
    %1566 = vmatprep.subr.mxu0 0.0
    %v1567 = vand.u32 %v165, 4294901760
    %v1568 = vsub.f32 %v165, %v1567
    %v1569 = vand.u32 %v1568, 4294901760
    %v1570 = vsub.f32 %v1568, %v1569
    %v1571 = vand.u32 %v1570, 4294901760
    %1572 = vmatpush1.msra.mxu0 %v1571
    %1573 = vmatprep.subr.mxu0 0.0
    %v1574 = vand.u32 %v164, 4294901760
    %v1575 = vsub.f32 %v164, %v1574
    %v1576 = vand.u32 %v1575, 4294901760
    %v1577 = vsub.f32 %v1575, %v1576
    %v1578 = vand.u32 %v1577, 4294901760
    %1579 = vmatpush1.msra.mxu0 %v1578
    %1580 = vmatprep.subr.mxu0 0.0
    %v1581 = vand.u32 %v163, 4294901760
    %v1582 = vsub.f32 %v163, %v1581
    %v1583 = vand.u32 %v1582, 4294901760
    %v1584 = vsub.f32 %v1582, %v1583
    %v1585 = vand.u32 %v1584, 4294901760
    %1586 = vmatpush1.msra.mxu0 %v1585
    %1587 = vmatprep.subr.mxu0 0.0
    %v1588 = vand.u32 %v162, 4294901760
    %v1589 = vsub.f32 %v162, %v1588
    %v1590 = vand.u32 %v1589, 4294901760
    %v1591 = vsub.f32 %v1589, %v1590
    %v1592 = vand.u32 %v1591, 4294901760
    %1593 = vmatpush1.msra.mxu0 %v1592
    %1594 = vmatprep.subr.mxu0 0.0
    %v1595 = vand.u32 %v161, 4294901760
    %v1596 = vsub.f32 %v161, %v1595
    %v1597 = vand.u32 %v1596, 4294901760
    %v1598 = vsub.f32 %v1596, %v1597
    %v1599 = vand.u32 %v1598, 4294901760
    %1600 = vmatpush1.msra.mxu0 %v1599
    %1601 = vmatprep.subr.mxu0 0.0
    %v1602 = vand.u32 %v160, 4294901760
    %v1603 = vsub.f32 %v160, %v1602
    %v1604 = vand.u32 %v1603, 4294901760
    %v1605 = vsub.f32 %v1603, %v1604
    %v1606 = vand.u32 %v1605, 4294901760
    %1607 = vmatpush1.msra.mxu0 %v1606
    %1608 = vmatprep.subr.mxu0 0.0
    %v1609 = vand.u32 %v159, 4294901760
    %v1610 = vsub.f32 %v159, %v1609
    %v1611 = vand.u32 %v1610, 4294901760
    %v1612 = vsub.f32 %v1610, %v1611
    %v1613 = vand.u32 %v1612, 4294901760
    %1614 = vmatpush1.msra.mxu0 %v1613
    %1615 = vmatprep.subr.mxu0 0.0
    %v1616 = vand.u32 %v158, 4294901760
    %v1617 = vsub.f32 %v158, %v1616
    %v1618 = vand.u32 %v1617, 4294901760
    %v1619 = vsub.f32 %v1617, %v1618
    %v1620 = vand.u32 %v1619, 4294901760
    %1621 = vmatpush1.msra.mxu0 %v1620
    %1622 = vmatprep.subr.mxu0 0.0
    %v1623 = vand.u32 %v157, 4294901760
    %v1624 = vsub.f32 %v157, %v1623
    %v1625 = vand.u32 %v1624, 4294901760
    %v1626 = vsub.f32 %v1624, %v1625
    %v1627 = vand.u32 %v1626, 4294901760
    %1628 = vmatpush1.msra.mxu0 %v1627
    %1629 = vmatprep.subr.mxu0 0.0
    %v1630 = vand.u32 %v156, 4294901760
    %v1631 = vsub.f32 %v156, %v1630
    %v1632 = vand.u32 %v1631, 4294901760
    %v1633 = vsub.f32 %v1631, %v1632
    %v1634 = vand.u32 %v1633, 4294901760
    %1635 = vmatpush1.msra.mxu0 %v1634
    %1636 = vmatprep.subr.mxu0 0.0
    %v1637 = vand.u32 %v155, 4294901760
    %v1638 = vsub.f32 %v155, %v1637
    %v1639 = vand.u32 %v1638, 4294901760
    %v1640 = vsub.f32 %v1638, %v1639
    %v1641 = vand.u32 %v1640, 4294901760
    %1642 = vmatpush1.msra.mxu0 %v1641
    %1643 = vmatprep.subr.mxu0 0.0
    %v1644 = vand.u32 %v154, 4294901760
    %v1645 = vsub.f32 %v154, %v1644
    %v1646 = vand.u32 %v1645, 4294901760
    %v1647 = vsub.f32 %v1645, %v1646
    %v1648 = vand.u32 %v1647, 4294901760
    %1649 = vmatpush1.msra.mxu0 %v1648
    %1650 = vmatprep.subr.mxu0 0.0
    %v1651 = vand.u32 %v153, 4294901760
    %v1652 = vsub.f32 %v153, %v1651
    %v1653 = vand.u32 %v1652, 4294901760
    %v1654 = vsub.f32 %v1652, %v1653
    %v1655 = vand.u32 %v1654, 4294901760
    %1656 = vmatpush1.msra.mxu0 %v1655
    %1657 = vmatprep.subr.mxu0 0.0
    %1658 = vmatpush2.msra.mxu0 0.0
    %1659 = vmatprep.subr.mxu0 0.0
    %1660 = vmatpush2.msra.mxu0 0.0
    %1661 = vmatprep.subr.mxu0 0.0
    %1662 = vmatpush2.msra.mxu0 0.0
    %1663 = vmatprep.subr.mxu0 0.0
    %1664 = vmatpush2.msra.mxu0 0.0
    %1665 = vmatprep.subr.mxu0 0.0
    %1666 = vmatpush2.msra.mxu0 0.0
    %1667 = vmatprep.subr.mxu0 0.0
    %1668 = vmatpush2.msra.mxu0 0.0
    %1669 = vmatprep.subr.mxu0 0.0
    %1670 = vmatpush2.msra.mxu0 0.0
    %1671 = vmatprep.subr.mxu0 0.0
    %1672 = vmatpush2.msra.mxu0 0.0
    %1673 = vmatprep.subr.mxu0 0.0
    %1674 = vmatpush2.msra.mxu0 0.0
    %1675 = vmatprep.subr.mxu0 0.0
    %1676 = vmatpush2.msra.mxu0 0.0
    %1677 = vmatprep.subr.mxu0 0.0
    %1678 = vmatpush2.msra.mxu0 0.0
    %1679 = vmatprep.subr.mxu0 0.0
    %1680 = vmatpush2.msra.mxu0 0.0
    %1681 = vmatprep.subr.mxu0 0.0
    %1682 = vmatpush2.msra.mxu0 0.0
    %1683 = vmatprep.subr.mxu0 0.0
    %1684 = vmatpush2.msra.mxu0 0.0
    %1685 = vmatprep.subr.mxu0 0.0
    %1686 = vmatpush2.msra.mxu0 0.0
    %1687 = vmatprep.subr.mxu0 0.0
    %1688 = vmatpush2.msra.mxu0 0.0
    %1689 = vmatprep.mubr.f32.mxu0 0.0
    %v1690 = vand.u32 %v1453, 4294901760
    %1691 = vmatmul.mubr.f32.gmra.mxu0 %v1690
    %v1692 = vpop.f32.mrf.mxu0
    %v1693 = vadd.f32 %v1542, %v1692
    %v1694 = vpop.f32.mrf.mxu0
    %1695 = vdwg.mxu0
    %1696 = vmatprep.subr.mxu0 0.0
    %v1697 = vand.u32 %v168, 4294901760
    %v1698 = vsub.f32 %v168, %v1697
    %1699 = vmatpush1.msra.mxu0 %v1698
    %1700 = vmatprep.subr.mxu0 0.0
    %v1701 = vand.u32 %v167, 4294901760
    %v1702 = vsub.f32 %v167, %v1701
    %1703 = vmatpush1.msra.mxu0 %v1702
    %1704 = vmatprep.subr.mxu0 0.0
    %v1705 = vand.u32 %v166, 4294901760
    %v1706 = vsub.f32 %v166, %v1705
    %1707 = vmatpush1.msra.mxu0 %v1706
    %1708 = vmatprep.subr.mxu0 0.0
    %v1709 = vand.u32 %v165, 4294901760
    %v1710 = vsub.f32 %v165, %v1709
    %1711 = vmatpush1.msra.mxu0 %v1710
    %1712 = vmatprep.subr.mxu0 0.0
    %v1713 = vand.u32 %v164, 4294901760
    %v1714 = vsub.f32 %v164, %v1713
    %1715 = vmatpush1.msra.mxu0 %v1714
    %1716 = vmatprep.subr.mxu0 0.0
    %v1717 = vand.u32 %v163, 4294901760
    %v1718 = vsub.f32 %v163, %v1717
    %1719 = vmatpush1.msra.mxu0 %v1718
    %1720 = vmatprep.subr.mxu0 0.0
    %v1721 = vand.u32 %v162, 4294901760
    %v1722 = vsub.f32 %v162, %v1721
    %1723 = vmatpush1.msra.mxu0 %v1722
    %1724 = vmatprep.subr.mxu0 0.0
    %v1725 = vand.u32 %v161, 4294901760
    %v1726 = vsub.f32 %v161, %v1725
    %1727 = vmatpush1.msra.mxu0 %v1726
    %1728 = vmatprep.subr.mxu0 0.0
    %v1729 = vand.u32 %v160, 4294901760
    %v1730 = vsub.f32 %v160, %v1729
    %1731 = vmatpush1.msra.mxu0 %v1730
    %1732 = vmatprep.subr.mxu0 0.0
    %v1733 = vand.u32 %v159, 4294901760
    %v1734 = vsub.f32 %v159, %v1733
    %1735 = vmatpush1.msra.mxu0 %v1734
    %1736 = vmatprep.subr.mxu0 0.0
    %v1737 = vand.u32 %v158, 4294901760
    %v1738 = vsub.f32 %v158, %v1737
    %1739 = vmatpush1.msra.mxu0 %v1738
    %1740 = vmatprep.subr.mxu0 0.0
    %v1741 = vand.u32 %v157, 4294901760
    %v1742 = vsub.f32 %v157, %v1741
    %1743 = vmatpush1.msra.mxu0 %v1742
    %1744 = vmatprep.subr.mxu0 0.0
    %v1745 = vand.u32 %v156, 4294901760
    %v1746 = vsub.f32 %v156, %v1745
    %1747 = vmatpush1.msra.mxu0 %v1746
    %1748 = vmatprep.subr.mxu0 0.0
    %v1749 = vand.u32 %v155, 4294901760
    %v1750 = vsub.f32 %v155, %v1749
    %1751 = vmatpush1.msra.mxu0 %v1750
    %1752 = vmatprep.subr.mxu0 0.0
    %v1753 = vand.u32 %v154, 4294901760
    %v1754 = vsub.f32 %v154, %v1753
    %1755 = vmatpush1.msra.mxu0 %v1754
    %1756 = vmatprep.subr.mxu0 0.0
    %v1757 = vand.u32 %v153, 4294901760
    %v1758 = vsub.f32 %v153, %v1757
    %1759 = vmatpush1.msra.mxu0 %v1758
    %1760 = vmatprep.subr.mxu0 0.0
    %1761 = vmatpush2.msra.mxu0 0.0
    %1762 = vmatprep.subr.mxu0 0.0
    %1763 = vmatpush2.msra.mxu0 0.0
    %1764 = vmatprep.subr.mxu0 0.0
    %1765 = vmatpush2.msra.mxu0 0.0
    %1766 = vmatprep.subr.mxu0 0.0
    %1767 = vmatpush2.msra.mxu0 0.0
    %1768 = vmatprep.subr.mxu0 0.0
    %1769 = vmatpush2.msra.mxu0 0.0
    %1770 = vmatprep.subr.mxu0 0.0
    %1771 = vmatpush2.msra.mxu0 0.0
    %1772 = vmatprep.subr.mxu0 0.0
    %1773 = vmatpush2.msra.mxu0 0.0
    %1774 = vmatprep.subr.mxu0 0.0
    %1775 = vmatpush2.msra.mxu0 0.0
    %1776 = vmatprep.subr.mxu0 0.0
    %1777 = vmatpush2.msra.mxu0 0.0
    %1778 = vmatprep.subr.mxu0 0.0
    %1779 = vmatpush2.msra.mxu0 0.0
    %1780 = vmatprep.subr.mxu0 0.0
    %1781 = vmatpush2.msra.mxu0 0.0
    %1782 = vmatprep.subr.mxu0 0.0
    %1783 = vmatpush2.msra.mxu0 0.0
    %1784 = vmatprep.subr.mxu0 0.0
    %1785 = vmatpush2.msra.mxu0 0.0
    %1786 = vmatprep.subr.mxu0 0.0
    %1787 = vmatpush2.msra.mxu0 0.0
    %1788 = vmatprep.subr.mxu0 0.0
    %1789 = vmatpush2.msra.mxu0 0.0
    %1790 = vmatprep.subr.mxu0 0.0
    %1791 = vmatpush2.msra.mxu0 0.0
    %1792 = vmatprep.mubr.f32.mxu0 0.0
    %v1793 = vand.u32 %v1453, 4294901760
    %v1794 = vsub.f32 %v1453, %v1793
    %1795 = vmatmul.mubr.f32.gmra.mxu0 %v1794
    %v1796 = vpop.f32.mrf.mxu0
    %v1797 = vadd.f32 %v1693, %v1796
    %v1798 = vpop.f32.mrf.mxu0
    %1799 = vdwg.mxu0
    %1800 = vmatprep.subr.mxu0 0.0
    %v1801 = vand.u32 %v168, 4294901760
    %1802 = vmatpush1.msra.mxu0 %v1801
    %1803 = vmatprep.subr.mxu0 0.0
    %v1804 = vand.u32 %v167, 4294901760
    %1805 = vmatpush1.msra.mxu0 %v1804
    %1806 = vmatprep.subr.mxu0 0.0
    %v1807 = vand.u32 %v166, 4294901760
    %1808 = vmatpush1.msra.mxu0 %v1807
    %1809 = vmatprep.subr.mxu0 0.0
    %v1810 = vand.u32 %v165, 4294901760
    %1811 = vmatpush1.msra.mxu0 %v1810
    %1812 = vmatprep.subr.mxu0 0.0
    %v1813 = vand.u32 %v164, 4294901760
    %1814 = vmatpush1.msra.mxu0 %v1813
    %1815 = vmatprep.subr.mxu0 0.0
    %v1816 = vand.u32 %v163, 4294901760
    %1817 = vmatpush1.msra.mxu0 %v1816
    %1818 = vmatprep.subr.mxu0 0.0
    %v1819 = vand.u32 %v162, 4294901760
    %1820 = vmatpush1.msra.mxu0 %v1819
    %1821 = vmatprep.subr.mxu0 0.0
    %v1822 = vand.u32 %v161, 4294901760
    %1823 = vmatpush1.msra.mxu0 %v1822
    %1824 = vmatprep.subr.mxu0 0.0
    %v1825 = vand.u32 %v160, 4294901760
    %1826 = vmatpush1.msra.mxu0 %v1825
    %1827 = vmatprep.subr.mxu0 0.0
    %v1828 = vand.u32 %v159, 4294901760
    %1829 = vmatpush1.msra.mxu0 %v1828
    %1830 = vmatprep.subr.mxu0 0.0
    %v1831 = vand.u32 %v158, 4294901760
    %1832 = vmatpush1.msra.mxu0 %v1831
    %1833 = vmatprep.subr.mxu0 0.0
    %v1834 = vand.u32 %v157, 4294901760
    %1835 = vmatpush1.msra.mxu0 %v1834
    %1836 = vmatprep.subr.mxu0 0.0
    %v1837 = vand.u32 %v156, 4294901760
    %1838 = vmatpush1.msra.mxu0 %v1837
    %1839 = vmatprep.subr.mxu0 0.0
    %v1840 = vand.u32 %v155, 4294901760
    %1841 = vmatpush1.msra.mxu0 %v1840
    %1842 = vmatprep.subr.mxu0 0.0
    %v1843 = vand.u32 %v154, 4294901760
    %1844 = vmatpush1.msra.mxu0 %v1843
    %1845 = vmatprep.subr.mxu0 0.0
    %v1846 = vand.u32 %v153, 4294901760
    %1847 = vmatpush1.msra.mxu0 %v1846
    %1848 = vmatprep.subr.mxu0 0.0
    %1849 = vmatpush2.msra.mxu0 0.0
    %1850 = vmatprep.subr.mxu0 0.0
    %1851 = vmatpush2.msra.mxu0 0.0
    %1852 = vmatprep.subr.mxu0 0.0
    %1853 = vmatpush2.msra.mxu0 0.0
    %1854 = vmatprep.subr.mxu0 0.0
    %1855 = vmatpush2.msra.mxu0 0.0
    %1856 = vmatprep.subr.mxu0 0.0
    %1857 = vmatpush2.msra.mxu0 0.0
    %1858 = vmatprep.subr.mxu0 0.0
    %1859 = vmatpush2.msra.mxu0 0.0
    %1860 = vmatprep.subr.mxu0 0.0
    %1861 = vmatpush2.msra.mxu0 0.0
    %1862 = vmatprep.subr.mxu0 0.0
    %1863 = vmatpush2.msra.mxu0 0.0
    %1864 = vmatprep.subr.mxu0 0.0
    %1865 = vmatpush2.msra.mxu0 0.0
    %1866 = vmatprep.subr.mxu0 0.0
    %1867 = vmatpush2.msra.mxu0 0.0
    %1868 = vmatprep.subr.mxu0 0.0
    %1869 = vmatpush2.msra.mxu0 0.0
    %1870 = vmatprep.subr.mxu0 0.0
    %1871 = vmatpush2.msra.mxu0 0.0
    %1872 = vmatprep.subr.mxu0 0.0
    %1873 = vmatpush2.msra.mxu0 0.0
    %1874 = vmatprep.subr.mxu0 0.0
    %1875 = vmatpush2.msra.mxu0 0.0
    %1876 = vmatprep.subr.mxu0 0.0
    %1877 = vmatpush2.msra.mxu0 0.0
    %1878 = vmatprep.subr.mxu0 0.0
    %1879 = vmatpush2.msra.mxu0 0.0
    %1880 = vmatprep.mubr.f32.mxu0 0.0
    %v1881 = vand.u32 %v1453, 4294901760
    %v1882 = vsub.f32 %v1453, %v1881
    %v1883 = vand.u32 %v1882, 4294901760
    %1884 = vmatmul.mubr.f32.gmra.mxu0 %v1883
    %v1885 = vpop.f32.mrf.mxu0
    %v1886 = vadd.f32 %v1797, %v1885
    %v1887 = vpop.f32.mrf.mxu0
    %1888 = vdwg.mxu0
    %1889 = vmatprep.subr.mxu0 0.0
    %v1890 = vand.u32 %v168, 4294901760
    %v1891 = vsub.f32 %v168, %v1890
    %v1892 = vand.u32 %v1891, 4294901760
    %1893 = vmatpush1.msra.mxu0 %v1892
    %1894 = vmatprep.subr.mxu0 0.0
    %v1895 = vand.u32 %v167, 4294901760
    %v1896 = vsub.f32 %v167, %v1895
    %v1897 = vand.u32 %v1896, 4294901760
    %1898 = vmatpush1.msra.mxu0 %v1897
    %1899 = vmatprep.subr.mxu0 0.0
    %v1900 = vand.u32 %v166, 4294901760
    %v1901 = vsub.f32 %v166, %v1900
    %v1902 = vand.u32 %v1901, 4294901760
    %1903 = vmatpush1.msra.mxu0 %v1902
    %1904 = vmatprep.subr.mxu0 0.0
    %v1905 = vand.u32 %v165, 4294901760
    %v1906 = vsub.f32 %v165, %v1905
    %v1907 = vand.u32 %v1906, 4294901760
    %1908 = vmatpush1.msra.mxu0 %v1907
    %1909 = vmatprep.subr.mxu0 0.0
    %v1910 = vand.u32 %v164, 4294901760
    %v1911 = vsub.f32 %v164, %v1910
    %v1912 = vand.u32 %v1911, 4294901760
    %1913 = vmatpush1.msra.mxu0 %v1912
    %1914 = vmatprep.subr.mxu0 0.0
    %v1915 = vand.u32 %v163, 4294901760
    %v1916 = vsub.f32 %v163, %v1915
    %v1917 = vand.u32 %v1916, 4294901760
    %1918 = vmatpush1.msra.mxu0 %v1917
    %1919 = vmatprep.subr.mxu0 0.0
    %v1920 = vand.u32 %v162, 4294901760
    %v1921 = vsub.f32 %v162, %v1920
    %v1922 = vand.u32 %v1921, 4294901760
    %1923 = vmatpush1.msra.mxu0 %v1922
    %1924 = vmatprep.subr.mxu0 0.0
    %v1925 = vand.u32 %v161, 4294901760
    %v1926 = vsub.f32 %v161, %v1925
    %v1927 = vand.u32 %v1926, 4294901760
    %1928 = vmatpush1.msra.mxu0 %v1927
    %1929 = vmatprep.subr.mxu0 0.0
    %v1930 = vand.u32 %v160, 4294901760
    %v1931 = vsub.f32 %v160, %v1930
    %v1932 = vand.u32 %v1931, 4294901760
    %1933 = vmatpush1.msra.mxu0 %v1932
    %1934 = vmatprep.subr.mxu0 0.0
    %v1935 = vand.u32 %v159, 4294901760
    %v1936 = vsub.f32 %v159, %v1935
    %v1937 = vand.u32 %v1936, 4294901760
    %1938 = vmatpush1.msra.mxu0 %v1937
    %1939 = vmatprep.subr.mxu0 0.0
    %v1940 = vand.u32 %v158, 4294901760
    %v1941 = vsub.f32 %v158, %v1940
    %v1942 = vand.u32 %v1941, 4294901760
    %1943 = vmatpush1.msra.mxu0 %v1942
    %1944 = vmatprep.subr.mxu0 0.0
    %v1945 = vand.u32 %v157, 4294901760
    %v1946 = vsub.f32 %v157, %v1945
    %v1947 = vand.u32 %v1946, 4294901760
    %1948 = vmatpush1.msra.mxu0 %v1947
    %1949 = vmatprep.subr.mxu0 0.0
    %v1950 = vand.u32 %v156, 4294901760
    %v1951 = vsub.f32 %v156, %v1950
    %v1952 = vand.u32 %v1951, 4294901760
    %1953 = vmatpush1.msra.mxu0 %v1952
    %1954 = vmatprep.subr.mxu0 0.0
    %v1955 = vand.u32 %v155, 4294901760
    %v1956 = vsub.f32 %v155, %v1955
    %v1957 = vand.u32 %v1956, 4294901760
    %1958 = vmatpush1.msra.mxu0 %v1957
    %1959 = vmatprep.subr.mxu0 0.0
    %v1960 = vand.u32 %v154, 4294901760
    %v1961 = vsub.f32 %v154, %v1960
    %v1962 = vand.u32 %v1961, 4294901760
    %1963 = vmatpush1.msra.mxu0 %v1962
    %1964 = vmatprep.subr.mxu0 0.0
    %v1965 = vand.u32 %v153, 4294901760
    %v1966 = vsub.f32 %v153, %v1965
    %v1967 = vand.u32 %v1966, 4294901760
    %1968 = vmatpush1.msra.mxu0 %v1967
    %1969 = vmatprep.subr.mxu0 0.0
    %1970 = vmatpush2.msra.mxu0 0.0
    %1971 = vmatprep.subr.mxu0 0.0
    %1972 = vmatpush2.msra.mxu0 0.0
    %1973 = vmatprep.subr.mxu0 0.0
    %1974 = vmatpush2.msra.mxu0 0.0
    %1975 = vmatprep.subr.mxu0 0.0
    %1976 = vmatpush2.msra.mxu0 0.0
    %1977 = vmatprep.subr.mxu0 0.0
    %1978 = vmatpush2.msra.mxu0 0.0
    %1979 = vmatprep.subr.mxu0 0.0
    %1980 = vmatpush2.msra.mxu0 0.0
    %1981 = vmatprep.subr.mxu0 0.0
    %1982 = vmatpush2.msra.mxu0 0.0
    %1983 = vmatprep.subr.mxu0 0.0
    %1984 = vmatpush2.msra.mxu0 0.0
    %1985 = vmatprep.subr.mxu0 0.0
    %1986 = vmatpush2.msra.mxu0 0.0
    %1987 = vmatprep.subr.mxu0 0.0
    %1988 = vmatpush2.msra.mxu0 0.0
    %1989 = vmatprep.subr.mxu0 0.0
    %1990 = vmatpush2.msra.mxu0 0.0
    %1991 = vmatprep.subr.mxu0 0.0
    %1992 = vmatpush2.msra.mxu0 0.0
    %1993 = vmatprep.subr.mxu0 0.0
    %1994 = vmatpush2.msra.mxu0 0.0
    %1995 = vmatprep.subr.mxu0 0.0
    %1996 = vmatpush2.msra.mxu0 0.0
    %1997 = vmatprep.subr.mxu0 0.0
    %1998 = vmatpush2.msra.mxu0 0.0
    %1999 = vmatprep.subr.mxu0 0.0
    %2000 = vmatpush2.msra.mxu0 0.0
    %2001 = vmatprep.mubr.f32.mxu0 0.0
    %v2002 = vand.u32 %v1453, 4294901760
    %2003 = vmatmul.mubr.f32.gmra.mxu0 %v2002
    %v2004 = vpop.f32.mrf.mxu0
    %v2005 = vadd.f32 %v1886, %v2004
    %v2006 = vpop.f32.mrf.mxu0
    %2007 = vdwg.mxu0
    %2008 = vmatprep.subr.mxu0 0.0
    %v2009 = vand.u32 %v168, 4294901760
    %2010 = vmatpush1.msra.mxu0 %v2009
    %2011 = vmatprep.subr.mxu0 0.0
    %v2012 = vand.u32 %v167, 4294901760
    %2013 = vmatpush1.msra.mxu0 %v2012
    %2014 = vmatprep.subr.mxu0 0.0
    %v2015 = vand.u32 %v166, 4294901760
    %2016 = vmatpush1.msra.mxu0 %v2015
    %2017 = vmatprep.subr.mxu0 0.0
    %v2018 = vand.u32 %v165, 4294901760
    %2019 = vmatpush1.msra.mxu0 %v2018
    %2020 = vmatprep.subr.mxu0 0.0
    %v2021 = vand.u32 %v164, 4294901760
    %2022 = vmatpush1.msra.mxu0 %v2021
    %2023 = vmatprep.subr.mxu0 0.0
    %v2024 = vand.u32 %v163, 4294901760
    %2025 = vmatpush1.msra.mxu0 %v2024
    %2026 = vmatprep.subr.mxu0 0.0
    %v2027 = vand.u32 %v162, 4294901760
    %2028 = vmatpush1.msra.mxu0 %v2027
    %2029 = vmatprep.subr.mxu0 0.0
    %v2030 = vand.u32 %v161, 4294901760
    %2031 = vmatpush1.msra.mxu0 %v2030
    %2032 = vmatprep.subr.mxu0 0.0
    %v2033 = vand.u32 %v160, 4294901760
    %2034 = vmatpush1.msra.mxu0 %v2033
    %2035 = vmatprep.subr.mxu0 0.0
    %v2036 = vand.u32 %v159, 4294901760
    %2037 = vmatpush1.msra.mxu0 %v2036
    %2038 = vmatprep.subr.mxu0 0.0
    %v2039 = vand.u32 %v158, 4294901760
    %2040 = vmatpush1.msra.mxu0 %v2039
    %2041 = vmatprep.subr.mxu0 0.0
    %v2042 = vand.u32 %v157, 4294901760
    %2043 = vmatpush1.msra.mxu0 %v2042
    %2044 = vmatprep.subr.mxu0 0.0
    %v2045 = vand.u32 %v156, 4294901760
    %2046 = vmatpush1.msra.mxu0 %v2045
    %2047 = vmatprep.subr.mxu0 0.0
    %v2048 = vand.u32 %v155, 4294901760
    %2049 = vmatpush1.msra.mxu0 %v2048
    %2050 = vmatprep.subr.mxu0 0.0
    %v2051 = vand.u32 %v154, 4294901760
    %2052 = vmatpush1.msra.mxu0 %v2051
    %2053 = vmatprep.subr.mxu0 0.0
    %v2054 = vand.u32 %v153, 4294901760
    %2055 = vmatpush1.msra.mxu0 %v2054
    %2056 = vmatprep.subr.mxu0 0.0
    %2057 = vmatpush2.msra.mxu0 0.0
    %2058 = vmatprep.subr.mxu0 0.0
    %2059 = vmatpush2.msra.mxu0 0.0
    %2060 = vmatprep.subr.mxu0 0.0
    %2061 = vmatpush2.msra.mxu0 0.0
    %2062 = vmatprep.subr.mxu0 0.0
    %2063 = vmatpush2.msra.mxu0 0.0
    %2064 = vmatprep.subr.mxu0 0.0
    %2065 = vmatpush2.msra.mxu0 0.0
    %2066 = vmatprep.subr.mxu0 0.0
    %2067 = vmatpush2.msra.mxu0 0.0
    %2068 = vmatprep.subr.mxu0 0.0
    %2069 = vmatpush2.msra.mxu0 0.0
    %2070 = vmatprep.subr.mxu0 0.0
    %2071 = vmatpush2.msra.mxu0 0.0
    %2072 = vmatprep.subr.mxu0 0.0
    %2073 = vmatpush2.msra.mxu0 0.0
    %2074 = vmatprep.subr.mxu0 0.0
    %2075 = vmatpush2.msra.mxu0 0.0
    %2076 = vmatprep.subr.mxu0 0.0
    %2077 = vmatpush2.msra.mxu0 0.0
    %2078 = vmatprep.subr.mxu0 0.0
    %2079 = vmatpush2.msra.mxu0 0.0
    %2080 = vmatprep.subr.mxu0 0.0
    %2081 = vmatpush2.msra.mxu0 0.0
    %2082 = vmatprep.subr.mxu0 0.0
    %2083 = vmatpush2.msra.mxu0 0.0
    %2084 = vmatprep.subr.mxu0 0.0
    %2085 = vmatpush2.msra.mxu0 0.0
    %2086 = vmatprep.subr.mxu0 0.0
    %2087 = vmatpush2.msra.mxu0 0.0
    %2088 = vmatprep.mubr.f32.mxu0 0.0
    %v2089 = vand.u32 %v1453, 4294901760
    %2090 = vmatmul.mubr.f32.gmra.mxu0 %v2089
    %v2091 = vpop.f32.mrf.mxu0
    %v2092 = vadd.f32 %v2005, %v2091
    %v2093 = vpop.f32.mrf.mxu0
    %2094 = vdwg.mxu0
    %v2095 = vmax.f32 %v1450, 1e-14
    %v2096 = vrsqrt.pop %v2095
    %v2097 = vmax.f32 %v2092, 1e-14
    %v2098 = vrsqrt.pop %v2097
    %v2099 = vmul.f32 %v2096, %v2098
    %v2100 = vmul.f32 %v808, %v2099
    %v2101 = vsub.f32 1.0, %v152
    %v2102 = vsub.f32 1.0, %v2100
    %v2103 = vmul.f32 %v2102, %v2102
    %v2104 = vmul.f32 %v2101, %v2103
    %v2105 = vsub.f32 %v2100, 0.5
    %v2106 = vmax.f32 %v2105, 0.0
    %v2107 = vmul.f32 %v2106, %v2106
    %v2108 = vmul.f32 %v152, %v2107
    %v2109 = vadd.f32 %v2104, %v2108
    %s2110 = sadd.s32 0, 0
    %s2111 = sadd.s32 %s2110, 1
    %s2112 = smul.u32 %s2111, 32
    %p2113 = scmp.gt.s32.totalorder %s2112, 8
    // Predicated region
    $region22: #{tpu_custom_call.1} parent=1 // pred_check
      %p2114 = pneg %p2113
    $region23: #{tpu_custom_call.1} parent=1 // pred_check_branch
      %2116 = sbr.rel (%p2114) target = $region25
    $region24: #{tpu_custom_call.1} parent=1 // pred_region
      %s2117 = smul.u32 %s2110, 8
      %v2118 = vlaneseq
      %v2119 = vshrl.u32 %v2118, 7
      %v2120 = vstv %s2117
      %v2121 = vadd.s32 %v2120, %v2119
      %v2122 = vmul.u32 %v2121, 4
      %v2123 = vlaneseq
      %v2124 = vand.u32 %v2123, 127
      %v2125 = vadd.s32 %v2122, %v2124
      %vm2126 = vcmp.lt.s32.totalorder %v2125, 8
      %v2127 = vsel %vm2126, %v2109, 0.0
      %v2128 = vld [vmem:[#allocation2] sm:$0x1]
      %vm2129 = vcmask 31744
      %v2130 = vsel %vm2129, %v2127, 0.0
      %2131 = vadd.xlane.f32.xlu0 %v2130
      %v2132 = vpop.xlane.xlu0 %2131
      %v2133 = vrot.slane %v2132, 4
      %v2134 = vadd.f32 %v2132, %v2133
      %v2135 = vrot.slane %v2134, 2
      %v2136 = vadd.f32 %v2134, %v2135
      %v2137 = vrot.slane %v2136, 1
      %v2138 = vadd.f32 %v2136, %v2137
      %s2139 = vtos %v2138
      %v2140 = vstv %s2139
      %v2141 = vadd.f32 %v2128, %v2140
      %vm2142 = vcmask 0
      %2143 = vst.msk [vmem:[#allocation2] sm:$0x1] %vm2142, %v2141
    $region25: #{tpu_custom_call.1} parent=1 // pred_fallthru
      _
    %p2144 = scmp.le.s32.totalorder %s2112, 8
    // Predicated region
    $region26: #{tpu_custom_call.1} parent=1 // pred_check
      %p2145 = pneg %p2144
    $region27: #{tpu_custom_call.1} parent=1 // pred_check_branch
      %2147 = sbr.rel (%p2145) target = $region29
    $region28: #{tpu_custom_call.1} parent=1 // pred_region
      %v2148 = vld [vmem:[#allocation2] sm:$0x1]
      %vm2149 = vcmask 31744
      %v2150 = vsel %vm2149, %v2109, 0.0
      %2151 = vadd.xlane.f32.xlu0 %v2150
      %v2152 = vpop.xlane.xlu0 %2151
      %v2153 = vrot.slane %v2152, 4
      %v2154 = vadd.f32 %v2152, %v2153
      %v2155 = vrot.slane %v2154, 2
      %v2156 = vadd.f32 %v2154, %v2155
      %v2157 = vrot.slane %v2156, 1
      %v2158 = vadd.f32 %v2156, %v2157
      %s2159 = vtos %v2158
      %v2160 = vstv %s2159
      %v2161 = vadd.f32 %v2148, %v2160
      %vm2162 = vcmask 0
      %2163 = vst.msk [vmem:[#allocation2] sm:$0x1] %vm2162, %v2161
    $region29: #{tpu_custom_call.1} parent=1 // pred_fallthru
      _
    // Predicated region
    $region30: #{tpu_custom_call.1} parent=1 // pred_check
      _
    $region31: #{tpu_custom_call.1} parent=1 // pred_check_branch
      %2165 = sbr.rel (0) target = $region33
    $region32: #{tpu_custom_call.1} parent=1 // pred_region
      %s2167 = ssub.s32 16, 16
      %2168 = vsyncadd [#allocation3], %s2167
      %s2170 = sshll.u32 [#allocation2], 4
      %s2171 = int_to_ptr.vmem [resolvable:$true] %s2170
      %2173 = dma.vmem_to_hbm [thread:$0]  %s2171, 16, %s4, [#allocation3]
    $region33: #{tpu_custom_call.1} parent=1 // pred_fallthru
      _
    // Predicated region
    $region34: #{tpu_custom_call.1} parent=1 // pred_check
      _
    $region35: #{tpu_custom_call.1} parent=1 // pred_check_branch
      %2175 = sbr.rel (0) target = $region37
    $region36: #{tpu_custom_call.1} parent=1 // pred_region
      %2176 = dma.done [#allocation3], 16
    $region37: #{tpu_custom_call.1} parent=1 // pred_fallthru
      _
    %2177 = vsyncpa [#allocation3], 1

</llo_original>
